<compile_context>
chip_gen: v6e
topology: v6e:2x2x1
jax: 0.10.0
libtpu: 0.0.40
codegen_flags: <defaults>
</compile_context>

<pallas_src>
import functools

import jax
import jax.numpy as jnp
import numpy as np
from jax.experimental import pallas as pl
from jax.experimental.pallas import tpu as pltpu


def edge_update_kernel(a2_ref, eij_ref, r_ref,
                       w12a_ref, w12e_ref, b12_ref,
                       w3_ref, b3_ref, wr_ref, br_ref,
                       out_ref, *, nbr_fea_len):
    """One grid step = one block of `block_rows` edges (rows)."""

    def sig(t):  # sigmoid with exp + reciprocal both on the EUP slot
        return pl.reciprocal(1.0 + jnp.exp(-t), approx=True)

    edge = eij_ref[...].astype(jnp.bfloat16)      # (TM, NBR)   on-chip cast
    a2 = a2_ref[...]                              # (TM, 2A)    already bf16

    # First stage: fused W1|W2 matmul, split into edge / atom parts, f32 accum.
    h12 = (jnp.dot(edge, w12e_ref[...], preferred_element_type=jnp.float32)
           + jnp.dot(a2, w12a_ref[...], preferred_element_type=jnp.float32)
           + b12_ref[...])                        # (TM, 2*NBR)
    h1 = h12[:, :nbr_fea_len]                     # split on a 128-lane boundary
    h2 = h12[:, nbr_fea_len:]

    # e = silu(W1 x) * sigmoid(W2 x)
    e = (h1 * sig(h1)) * sig(h2)

    # Second stage.
    h3 = (jnp.dot(e.astype(jnp.bfloat16), w3_ref[...],
                  preferred_element_type=jnp.float32) + b3_ref[...])
    rr = (jnp.dot(r_ref[...].astype(jnp.bfloat16), wr_ref[...],
                  preferred_element_type=jnp.float32) + br_ref[...])

    # out = silu(W3 e) * (Wr bonds_r)       (lane-dense 128-wide f32 store)
    out_ref[...] = (h3 * sig(h3)) * rr


def _round_up(v, m):
    return ((v + m - 1) // m) * m


def edge_update(atom_fea, edge_ij, nbr_atoms, bonds_r, params, *, block_rows=1024):
    """atom_fea: (N, A) f32; edge_ij: (E, NBR) f32; nbr_atoms: (E, 2) int32;
    bonds_r: (E, 16) f32.  Returns (E, NBR) f32."""
    E, nbr = edge_ij.shape
    A = atom_fea.shape[-1]
    r_dim = bonds_r.shape[-1]

    # ---- wrapper-side layout plumbing (XLA) -------------------------------
    # Data-dependent row gather has no rectangular BlockSpec; done once here.
    # Only this small (E, 2A) bf16 slab is an HBM intermediate; edge_ij and
    # bonds_r are streamed into the kernel from their original buffers.
    # TODO(synk): further HBM saving: keep atom_fea resident in VMEM and gather
    # inside the kernel from a per-block nbr_atoms int32 input.
    atoms2 = jnp.concatenate(
        [jnp.take(atom_fea, nbr_atoms[:, 0], axis=0),
         jnp.take(atom_fea, nbr_atoms[:, 1], axis=0)], axis=-1
    ).astype(jnp.bfloat16)                                          # (E, 2A)

    # Fuse W1 / W2 (shared input); split the fused weight into atom / edge parts
    # so no concatenated activation buffer is ever materialized.
    w12 = jnp.concatenate([params["w1"], params["w2"]], axis=-1)    # (2A+NBR, 2*NBR)
    w12_a = w12[:2 * A].astype(jnp.bfloat16)                        # (2A,  2*NBR)
    w12_e = w12[2 * A:].astype(jnp.bfloat16)                        # (NBR, 2*NBR)
    b12 = jnp.concatenate([params["b1"], params["b2"]], axis=-1)    # (1, 2*NBR) f32
    w3 = params["w3"].astype(jnp.bfloat16)
    wr = params["wr"].astype(jnp.bfloat16)
    b3, br = params["b3"], params["br"]

    # Row-block size: large blocks amortize per-step overhead; keep >= 2 blocks
    # so megacore / dual-TC chips have parallel work.  No padding copies.
    block_rows = _round_up(int(block_rows), 8)
    block_rows = max(8, min(block_rows, _round_up((E + 1) // 2, 8)))
    n_blk = pl.cdiv(E, block_rows)

    def full(a):  # whole-array (grid-invariant, VMEM-resident) parameter block
        return pl.BlockSpec(a.shape, lambda i: (0, 0))

    # On v7x, shard the row-block axis across the two TensorCores.
    try:
        kind = jax.devices()[0].device_kind.lower()
    except Exception:
        kind = ""
    dim_sem = (pltpu.CORE_PARALLEL,) if "v7" in kind else ("parallel",)

    kernel = functools.partial(edge_update_kernel, nbr_fea_len=nbr)

    return pl.pallas_call(
        kernel,
        out_shape=jax.ShapeDtypeStruct((E, nbr), jnp.float32),
        grid_spec=pltpu.PrefetchScalarGridSpec(
            num_scalar_prefetch=0,
            grid=(n_blk,),
            in_specs=[pl.BlockSpec((block_rows, 2 * A), lambda i: (i, 0)),   # atoms2
                      pl.BlockSpec((block_rows, nbr), lambda i: (i, 0)),     # edge_ij
                      pl.BlockSpec((block_rows, r_dim), lambda i: (i, 0)),   # bonds_r
                      full(w12_a), full(w12_e), full(b12),
                      full(w3), full(b3), full(wr), full(br)],
            out_specs=pl.BlockSpec((block_rows, nbr), lambda i: (i, 0)),
        ),
        compiler_params=pltpu.CompilerParams(
            dimension_semantics=dim_sem,
            vmem_limit_bytes=32 * 1024 * 1024,   # gates block_rows sweeps on v5e/v7x
        ),
    )(atoms2, edge_ij, bonds_r, w12_a, w12_e, b12, w3, b3, wr, br)


def ref_forward(atom_fea, edge_ij, nbr_atoms, bonds_r, p):
    """Pure-JAX f32 reference of the same math (PyTorch EdgeUpdate.forward)."""
    x = jnp.concatenate([atom_fea[nbr_atoms[:, 0]],
                         atom_fea[nbr_atoms[:, 1]],
                         edge_ij], axis=-1)
    silu = lambda t: t * jax.nn.sigmoid(t)
    e = silu(x @ p["w1"] + p["b1"][0]) * jax.nn.sigmoid(x @ p["w2"] + p["b2"][0])
    return silu(e @ p["w3"] + p["b3"][0]) * (bonds_r @ p["wr"] + p["br"][0])


def init_params(key, atom_fea_len, nbr_fea_len):
    in_dim = 2 * atom_fea_len + nbr_fea_len
    ks = jax.random.split(key, 8)
    scale = 0.1

    def u(k, shape):
        return jax.random.uniform(k, shape, jnp.float32, -scale, scale)

    # Weights pre-transposed to (in, out); biases as (1, out).
    return {
        "w1": u(ks[0], (in_dim, nbr_fea_len)), "b1": u(ks[1], (1, nbr_fea_len)),
        "w2": u(ks[2], (in_dim, nbr_fea_len)), "b2": u(ks[3], (1, nbr_fea_len)),
        "wr": u(ks[4], (16, nbr_fea_len)),     "br": u(ks[5], (1, nbr_fea_len)),
        "w3": u(ks[6], (nbr_fea_len, nbr_fea_len)), "b3": u(ks[7], (1, nbr_fea_len)),
    }


if __name__ == "__main__":
    ATOM_FEA_LEN = 32      # atom feature width
    NBR_FEA_LEN = 128      # edge feature width (lane-dense: multiple of 128)
    N_ATOMS = 64
    N_EDGES = 500          # not a block multiple -> exercises the ragged last block

    key = jax.random.PRNGKey(0)
    k_a, k_e, k_n, k_r, k_p = jax.random.split(key, 5)

    atom_fea = jax.random.normal(k_a, (N_ATOMS, ATOM_FEA_LEN), jnp.float32)
    edge_ij = jax.random.normal(k_e, (N_EDGES, NBR_FEA_LEN), jnp.float32)
    nbr_atoms = jax.random.randint(k_n, (N_EDGES, 2), 0, N_ATOMS, jnp.int32)
    bonds_r = jax.random.normal(k_r, (N_EDGES, 16), jnp.float32)

    params = init_params(k_p, ATOM_FEA_LEN, NBR_FEA_LEN)

    out = jax.block_until_ready(edge_update(atom_fea, edge_ij, nbr_atoms, bonds_r, params))
    ref = jax.block_until_ready(ref_forward(atom_fea, edge_ij, nbr_atoms, bonds_r, params))

    # bf16 MXU operands + approx-EUP sigmoid -> relaxed tolerance vs the f32 ref.
    if not np.allclose(np.asarray(out), np.asarray(ref), rtol=3e-2, atol=3e-2):
        raise AssertionError("Pallas kernel output does not match JAX reference")

    print("KERNEL_OK")
</pallas_src>

<mosaic_0001>
module attributes {stable_mosaic.version = 11 : i64} {
  func.func @edge_update_kernel(%arg0: i32, %arg1: memref<256x64xbf16, #tpu.memory_space<vmem>>, %arg2: memref<256x128xf32, #tpu.memory_space<vmem>>, %arg3: memref<256x16xf32, #tpu.memory_space<vmem>>, %arg4: memref<64x256xbf16, #tpu.memory_space<vmem>>, %arg5: memref<128x256xbf16, #tpu.memory_space<vmem>>, %arg6: memref<1x256xf32, #tpu.memory_space<vmem>>, %arg7: memref<128x128xbf16, #tpu.memory_space<vmem>>, %arg8: memref<1x128xf32, #tpu.memory_space<vmem>>, %arg9: memref<16x128xbf16, #tpu.memory_space<vmem>>, %arg10: memref<1x128xf32, #tpu.memory_space<vmem>>, %arg11: memref<256x128xf32, #tpu.memory_space<vmem>>) attributes {dimension_semantics = [#tpu.dimension_semantics<parallel>], iteration_bounds = array<i64: 2>, scalar_prefetch = 0 : i64, scratch_operands = 0 : i64, tpu.core_type = #tpu.core_type<tc>, window_params = [{transform_indices = @transform_0, window_bounds = array<i64: 256, 64>}, {transform_indices = @transform_1, window_bounds = array<i64: 256, 128>}, {transform_indices = @transform_2, window_bounds = array<i64: 256, 16>}, {pipeline_mode = #tpu.pipeline_mode<synchronous>, transform_indices = @transform_3, window_bounds = array<i64: 64, 256>}, {pipeline_mode = #tpu.pipeline_mode<synchronous>, transform_indices = @transform_4, window_bounds = array<i64: 128, 256>}, {pipeline_mode = #tpu.pipeline_mode<synchronous>, transform_indices = @transform_5, window_bounds = array<i64: 1, 256>}, {pipeline_mode = #tpu.pipeline_mode<synchronous>, transform_indices = @transform_6, window_bounds = array<i64: 128, 128>}, {pipeline_mode = #tpu.pipeline_mode<synchronous>, transform_indices = @transform_7, window_bounds = array<i64: 1, 128>}, {pipeline_mode = #tpu.pipeline_mode<synchronous>, transform_indices = @transform_8, window_bounds = array<i64: 16, 128>}, {pipeline_mode = #tpu.pipeline_mode<synchronous>, transform_indices = @transform_9, window_bounds = array<i64: 1, 128>}, {transform_indices = @transform_10, window_bounds = array<i64: 256, 128>}]} {
    %c0 = arith.constant 0 : index
    %c0_0 = arith.constant 0 : index
    %0 = vector.load %arg2[%c0, %c0_0] : memref<256x128xf32, #tpu.memory_space<vmem>>, vector<256x128xf32>
    %1 = arith.truncf %0 : vector<256x128xf32> to vector<256x128xbf16>
    %c0_1 = arith.constant 0 : index
    %c0_2 = arith.constant 0 : index
    %2 = vector.load %arg1[%c0_1, %c0_2] : memref<256x64xbf16, #tpu.memory_space<vmem>>, vector<256x64xbf16>
    %c0_3 = arith.constant 0 : index
    %c0_4 = arith.constant 0 : index
    %3 = vector.load %arg5[%c0_3, %c0_4] : memref<128x256xbf16, #tpu.memory_space<vmem>>, vector<128x256xbf16>
    %cst = arith.constant dense<0.000000e+00> : vector<256x256xf32>
    %4 = tpu.matmul %1, %3, %cst {dimension_numbers = #tpu.dot_dimension_numbers<[1], [0], [0], [1], [0, 0, 1, 1], [], []>} : vector<256x128xbf16>, vector<128x256xbf16>, vector<256x256xf32> -> vector<256x256xf32>
    %c0_5 = arith.constant 0 : index
    %c0_6 = arith.constant 0 : index
    %5 = vector.load %arg4[%c0_5, %c0_6] : memref<64x256xbf16, #tpu.memory_space<vmem>>, vector<64x256xbf16>
    %cst_7 = arith.constant dense<0.000000e+00> : vector<256x256xf32>
    %6 = tpu.matmul %2, %5, %cst_7 {dimension_numbers = #tpu.dot_dimension_numbers<[1], [0], [0], [1], [0, 0, 1, 1], [], []>} : vector<256x64xbf16>, vector<64x256xbf16>, vector<256x256xf32> -> vector<256x256xf32>
    %7 = arith.addf %4, %6 : vector<256x256xf32>
    %c0_8 = arith.constant 0 : index
    %c0_9 = arith.constant 0 : index
    %8 = vector.load %arg6[%c0_8, %c0_9] : memref<1x256xf32, #tpu.memory_space<vmem>>, vector<1x256xf32>
    %9 = vector.broadcast %8 : vector<1x256xf32> to vector<256x256xf32>
    %10 = arith.addf %7, %9 : vector<256x256xf32>
    %11 = vector.extract_strided_slice %10 {offsets = [0, 0], sizes = [256, 128], strides = [1, 1]} : vector<256x256xf32> to vector<256x128xf32>
    %12 = vector.extract_strided_slice %10 {offsets = [0, 128], sizes = [256, 128], strides = [1, 1]} : vector<256x256xf32> to vector<256x128xf32>
    %cst_10 = arith.constant 0.000000e+00 : f32
    %13 = vector.broadcast %cst_10 : f32 to vector<256x128xf32>
    %14 = arith.subf %13, %11 : vector<256x128xf32>
    %15 = math.exp %14 : vector<256x128xf32>
    %cst_11 = arith.constant 1.000000e+00 : f32
    %16 = vector.broadcast %cst_11 : f32 to vector<256x128xf32>
    %17 = arith.addf %16, %15 : vector<256x128xf32>
    %18 = tpu.reciprocal %17 {approx = true} : vector<256x128xf32> -> vector<256x128xf32>
    %19 = arith.mulf %11, %18 : vector<256x128xf32>
    %cst_12 = arith.constant 0.000000e+00 : f32
    %20 = vector.broadcast %cst_12 : f32 to vector<256x128xf32>
    %21 = arith.subf %20, %12 : vector<256x128xf32>
    %22 = math.exp %21 : vector<256x128xf32>
    %cst_13 = arith.constant 1.000000e+00 : f32
    %23 = vector.broadcast %cst_13 : f32 to vector<256x128xf32>
    %24 = arith.addf %23, %22 : vector<256x128xf32>
    %25 = tpu.reciprocal %24 {approx = true} : vector<256x128xf32> -> vector<256x128xf32>
    %26 = arith.mulf %19, %25 : vector<256x128xf32>
    %27 = arith.truncf %26 : vector<256x128xf32> to vector<256x128xbf16>
    %c0_14 = arith.constant 0 : index
    %c0_15 = arith.constant 0 : index
    %28 = vector.load %arg7[%c0_14, %c0_15] : memref<128x128xbf16, #tpu.memory_space<vmem>>, vector<128x128xbf16>
    %cst_16 = arith.constant dense<0.000000e+00> : vector<256x128xf32>
    %29 = tpu.matmul %27, %28, %cst_16 {dimension_numbers = #tpu.dot_dimension_numbers<[1], [0], [0], [1], [0, 0, 1, 1], [], []>} : vector<256x128xbf16>, vector<128x128xbf16>, vector<256x128xf32> -> vector<256x128xf32>
    %c0_17 = arith.constant 0 : index
    %c0_18 = arith.constant 0 : index
    %30 = vector.load %arg8[%c0_17, %c0_18] : memref<1x128xf32, #tpu.memory_space<vmem>>, vector<1x128xf32>
    %31 = vector.broadcast %30 : vector<1x128xf32> to vector<256x128xf32>
    %32 = arith.addf %29, %31 : vector<256x128xf32>
    %c0_19 = arith.constant 0 : index
    %c0_20 = arith.constant 0 : index
    %33 = vector.load %arg3[%c0_19, %c0_20] : memref<256x16xf32, #tpu.memory_space<vmem>>, vector<256x16xf32>
    %34 = arith.truncf %33 : vector<256x16xf32> to vector<256x16xbf16>
    %c0_21 = arith.constant 0 : index
    %c0_22 = arith.constant 0 : index
    %35 = vector.load %arg9[%c0_21, %c0_22] : memref<16x128xbf16, #tpu.memory_space<vmem>>, vector<16x128xbf16>
    %cst_23 = arith.constant dense<0.000000e+00> : vector<256x128xf32>
    %36 = tpu.matmul %34, %35, %cst_23 {dimension_numbers = #tpu.dot_dimension_numbers<[1], [0], [0], [1], [0, 0, 1, 1], [], []>} : vector<256x16xbf16>, vector<16x128xbf16>, vector<256x128xf32> -> vector<256x128xf32>
    %c0_24 = arith.constant 0 : index
    %c0_25 = arith.constant 0 : index
    %37 = vector.load %arg10[%c0_24, %c0_25] : memref<1x128xf32, #tpu.memory_space<vmem>>, vector<1x128xf32>
    %38 = vector.broadcast %37 : vector<1x128xf32> to vector<256x128xf32>
    %39 = arith.addf %36, %38 : vector<256x128xf32>
    %cst_26 = arith.constant 0.000000e+00 : f32
    %40 = vector.broadcast %cst_26 : f32 to vector<256x128xf32>
    %41 = arith.subf %40, %32 : vector<256x128xf32>
    %42 = math.exp %41 : vector<256x128xf32>
    %cst_27 = arith.constant 1.000000e+00 : f32
    %43 = vector.broadcast %cst_27 : f32 to vector<256x128xf32>
    %44 = arith.addf %43, %42 : vector<256x128xf32>
    %45 = tpu.reciprocal %44 {approx = true} : vector<256x128xf32> -> vector<256x128xf32>
    %46 = arith.mulf %32, %45 : vector<256x128xf32>
    %47 = arith.mulf %46, %39 : vector<256x128xf32>
    %c0_28 = arith.constant 0 : index
    %c0_29 = arith.constant 0 : index
    %48 = vector.load %arg11[%c0_28, %c0_29] : memref<256x128xf32, #tpu.memory_space<vmem>>, vector<256x128xf32>
    tpu.vector_store %arg11[%c0_28, %c0_29], %47 {strides = array<i32>} : memref<256x128xf32, #tpu.memory_space<vmem>>, vector<256x128xf32>,
    return
  }
  func.func @transform_0(%arg0: i32) -> (i32, i32) {
    %c0_i32 = arith.constant 0 : i32
    %c0_i32_0 = arith.constant 0 : i32
    return %arg0, %c0_i32 : i32, i32
  }
  func.func @transform_1(%arg0: i32) -> (i32, i32) {
    %c0_i32 = arith.constant 0 : i32
    %c0_i32_0 = arith.constant 0 : i32
    return %arg0, %c0_i32 : i32, i32
  }
  func.func @transform_2(%arg0: i32) -> (i32, i32) {
    %c0_i32 = arith.constant 0 : i32
    %c0_i32_0 = arith.constant 0 : i32
    return %arg0, %c0_i32 : i32, i32
  }
  func.func @transform_3(%arg0: i32) -> (i32, i32) {
    %c0_i32 = arith.constant 0 : i32
    %c0_i32_0 = arith.constant 0 : i32
    %c0_i32_1 = arith.constant 0 : i32
    return %c0_i32, %c0_i32_0 : i32, i32
  }
  func.func @transform_4(%arg0: i32) -> (i32, i32) {
    %c0_i32 = arith.constant 0 : i32
    %c0_i32_0 = arith.constant 0 : i32
    %c0_i32_1 = arith.constant 0 : i32
    return %c0_i32, %c0_i32_0 : i32, i32
  }
  func.func @transform_5(%arg0: i32) -> (i32, i32) {
    %c0_i32 = arith.constant 0 : i32
    %c0_i32_0 = arith.constant 0 : i32
    %c0_i32_1 = arith.constant 0 : i32
    return %c0_i32, %c0_i32_0 : i32, i32
  }
  func.func @transform_6(%arg0: i32) -> (i32, i32) {
    %c0_i32 = arith.constant 0 : i32
    %c0_i32_0 = arith.constant 0 : i32
    %c0_i32_1 = arith.constant 0 : i32
    return %c0_i32, %c0_i32_0 : i32, i32
  }
  func.func @transform_7(%arg0: i32) -> (i32, i32) {
    %c0_i32 = arith.constant 0 : i32
    %c0_i32_0 = arith.constant 0 : i32
    %c0_i32_1 = arith.constant 0 : i32
    return %c0_i32, %c0_i32_0 : i32, i32
  }
  func.func @transform_8(%arg0: i32) -> (i32, i32) {
    %c0_i32 = arith.constant 0 : i32
    %c0_i32_0 = arith.constant 0 : i32
    %c0_i32_1 = arith.constant 0 : i32
    return %c0_i32, %c0_i32_0 : i32, i32
  }
  func.func @transform_9(%arg0: i32) -> (i32, i32) {
    %c0_i32 = arith.constant 0 : i32
    %c0_i32_0 = arith.constant 0 : i32
    %c0_i32_1 = arith.constant 0 : i32
    return %c0_i32, %c0_i32_0 : i32, i32
  }
  func.func @transform_10(%arg0: i32) -> (i32, i32) {
    %c0_i32 = arith.constant 0 : i32
    %c0_i32_0 = arith.constant 0 : i32
    return %arg0, %c0_i32 : i32, i32
  }
}

</mosaic_0001>

<llo_original>
// kernel: tpu_custom_call.1
$region0: #{tpu_custom_call.1}
  #allocation0 [shape = 'u32[]', space=smem, size = 0x4, offset = 0x4, fixed_abs, tag = 'smem constant byte address 0x4 - core index']
  #allocation1 [shape = 'u32[144,128]{1,0:T(1,128)}', space=vmem, size = 0x12000, scoped, tag = 'internal scratch']
  %s0 = inlined_call_operand.vmem [shape: bf16[500,64], index: 0, kind: input, shape index: {}]
  %s1 = inlined_call_operand.vmem [shape: f32[500,128], index: 1, kind: input, shape index: {}]
  %s2 = inlined_call_operand.vmem [shape: f32[500,16], index: 2, kind: input, shape index: {}]
  %s3 = inlined_call_operand.vmem [shape: bf16[64,256], index: 3, kind: input, shape index: {}]
  %s4 = inlined_call_operand.vmem [shape: bf16[128,256], index: 4, kind: input, shape index: {}]
  %s5 = inlined_call_operand.vmem [shape: f32[1,256], index: 5, kind: input, shape index: {}]
  %s6 = inlined_call_operand.vmem [shape: bf16[128,128], index: 6, kind: input, shape index: {}]
  %s7 = inlined_call_operand.vmem [shape: f32[1,128], index: 7, kind: input, shape index: {}]
  %s8 = inlined_call_operand.vmem [shape: bf16[16,128], index: 8, kind: input, shape index: {}]
  %s9 = inlined_call_operand.vmem [shape: f32[1,128], index: 9, kind: input, shape index: {}]
  %s10 = inlined_call_operand.hbm [shape: f32[500,128], index: 10, kind: output, shape index: {}]
  %s11 = sld [smem:[#allocation0]]
  $region73: #{tpu_custom_call.1} parent=0
    _
  %s13 = ssub.s32 1, %s11
  %s14 = scalar_select 0, %s13, %s11
  $region1: #{tpu_custom_call.1} parent=0
    #allocation2 [shape = 'u8[262144]{0}', space=vmem, size = 0x40000, scoped, tag = 'output window, operand 0']
    #allocation3 [shape = 's32[2]{0}', space=sflag, size = 0x8, scoped, tag = 'scoped memory for tpu_custom_call.1']
    %15 = vsyncpa [#allocation3], 0
    %s16 = scalar_lea.sflag [#allocation3], 1
    %17 = vsyncpa %s16, 0
    loop: start=0, step=1, limit=4
    $region2: #{tpu_custom_call.1} parent=1 // loop_pre_header
      _
    $region3: #{tpu_custom_call.1} parent=1 // loop_header
      %s19 = sphi 0, %s23
      %p20 = scmp.ge.s32.totalorder %s19, 4
      %s29 = sphi 0, %s31
      %s32 = sphi 0, %s29
      %s33 = sphi 0, %s32
      %s49 = sphi 0, %s33
      %s55 = sphi 0, %s57
      %s58 = sphi 0, %s55
      %s59 = sphi 0, %s58
      %s75 = sphi 0, %s59
      %s81 = sphi 0, %s83
      %s84 = sphi 0, %s81
      %s85 = sphi 0, %s84
      %s101 = sphi 0, %s85
      %s105 = sphi 0, %s105
      %s107 = sphi 0, %s105
      %s108 = sphi 0, %s107
      %s122 = sphi 0, %s108
      %s126 = sphi 0, %s126
      %s128 = sphi 0, %s126
      %s129 = sphi 0, %s128
      %s143 = sphi 0, %s129
      %s147 = sphi 0, %s147
      %s149 = sphi 0, %s147
      %s150 = sphi 0, %s149
      %s164 = sphi 0, %s150
      %s168 = sphi 0, %s168
      %s170 = sphi 0, %s168
      %s171 = sphi 0, %s170
      %s185 = sphi 0, %s171
      %s189 = sphi 0, %s189
      %s191 = sphi 0, %s189
      %s192 = sphi 0, %s191
      %s206 = sphi 0, %s192
      %s210 = sphi 0, %s210
      %s212 = sphi 0, %s210
      %s213 = sphi 0, %s212
      %s227 = sphi 0, %s213
      %s231 = sphi 0, %s231
      %s233 = sphi 0, %s231
      %s234 = sphi 0, %s233
      %s248 = sphi 0, %s234
      %s254 = sphi 0, %s256
      %s257 = sphi 0, %s254
      %s258 = sphi 0, %s257
      %s274 = sphi 0, %s258
    $region4: #{tpu_custom_call.1} parent=1 // loop_header_branch
      %22 = sbr.rel (%p20) target = $region8
    $region5: #{tpu_custom_call.1} parent=1 // loop_body
      %s24 = ssub.s32 %s19, 1
      %s25 = ssub.s32 %s19, 2
      %s26 = sadd.s32 %s19, 1
      %s27 = ssub.s32 %s19, %s26
      %p28 = scmp.eq.s32.totalorder %s27, 0
      %s30 = sadd.s32 %s29, 1
      %s31 = scalar_select %p28, %s29, %s30
      %p34 = pneg %p28
      %p35 = scmp.eq.s32.totalorder %s19, 1
      %p36 = por %p34, %p35
      %p37 = scmp.ne.s32.totalorder %s29, %s32
      %p38 = scmp.eq.s32.totalorder %s19, 0
      %p39 = por %p37, %p38
      %p40 = scmp.ne.s32.totalorder %s29, %s32
      %p41 = scmp.eq.s32.totalorder %s24, 1
      %p42 = por %p40, %p41
      %p43 = scmp.ne.s32.totalorder %s32, %s33
      %p44 = scmp.eq.s32.totalorder %s24, 0
      %p45 = por %p43, %p44
      %p46 = scmp.ne.s32.totalorder %s32, %s33
      %p47 = scmp.eq.s32.totalorder %s25, 1
      %p48 = por %p46, %p47
      %p50 = scmp.ne.s32.totalorder %s33, %s49
      %p51 = scmp.eq.s32.totalorder %s25, 0
      %p52 = por %p50, %p51
      %s53 = ssub.s32 %s19, %s26
      %p54 = scmp.eq.s32.totalorder %s53, 0
      %s56 = sadd.s32 %s55, 1
      %s57 = scalar_select %p54, %s55, %s56
      %p60 = pneg %p54
      %p61 = scmp.eq.s32.totalorder %s19, 1
      %p62 = por %p60, %p61
      %p63 = scmp.ne.s32.totalorder %s55, %s58
      %p64 = scmp.eq.s32.totalorder %s19, 0
      %p65 = por %p63, %p64
      %p66 = scmp.ne.s32.totalorder %s55, %s58
      %p67 = scmp.eq.s32.totalorder %s24, 1
      %p68 = por %p66, %p67
      %p69 = scmp.ne.s32.totalorder %s58, %s59
      %p70 = scmp.eq.s32.totalorder %s24, 0
      %p71 = por %p69, %p70
      %p72 = scmp.ne.s32.totalorder %s58, %s59
      %p73 = scmp.eq.s32.totalorder %s25, 1
      %p74 = por %p72, %p73
      %p76 = scmp.ne.s32.totalorder %s59, %s75
      %p77 = scmp.eq.s32.totalorder %s25, 0
      %p78 = por %p76, %p77
      %s79 = ssub.s32 %s19, %s26
      %p80 = scmp.eq.s32.totalorder %s79, 0
      %s82 = sadd.s32 %s81, 1
      %s83 = scalar_select %p80, %s81, %s82
      %p86 = pneg %p80
      %p87 = scmp.eq.s32.totalorder %s19, 1
      %p88 = por %p86, %p87
      %p89 = scmp.ne.s32.totalorder %s81, %s84
      %p90 = scmp.eq.s32.totalorder %s19, 0
      %p91 = por %p89, %p90
      %p92 = scmp.ne.s32.totalorder %s81, %s84
      %p93 = scmp.eq.s32.totalorder %s24, 1
      %p94 = por %p92, %p93
      %p95 = scmp.ne.s32.totalorder %s84, %s85
      %p96 = scmp.eq.s32.totalorder %s24, 0
      %p97 = por %p95, %p96
      %p98 = scmp.ne.s32.totalorder %s84, %s85
      %p99 = scmp.eq.s32.totalorder %s25, 1
      %p100 = por %p98, %p99
      %p102 = scmp.ne.s32.totalorder %s85, %s101
      %p103 = scmp.eq.s32.totalorder %s25, 0
      %p104 = por %p102, %p103
      %s106 = sadd.s32 %s105, 1
      %p109 = scmp.eq.s32.totalorder %s19, 1
      %p110 = scmp.ne.s32.totalorder %s105, %s107
      %p111 = scmp.eq.s32.totalorder %s19, 0
      %p112 = por %p110, %p111
      %p113 = scmp.ne.s32.totalorder %s105, %s107
      %p114 = scmp.eq.s32.totalorder %s24, 1
      %p115 = por %p113, %p114
      %p116 = scmp.ne.s32.totalorder %s107, %s108
      %p117 = scmp.eq.s32.totalorder %s24, 0
      %p118 = por %p116, %p117
      %p119 = scmp.ne.s32.totalorder %s107, %s108
      %p120 = scmp.eq.s32.totalorder %s25, 1
      %p121 = por %p119, %p120
      %p123 = scmp.ne.s32.totalorder %s108, %s122
      %p124 = scmp.eq.s32.totalorder %s25, 0
      %p125 = por %p123, %p124
      %s127 = sadd.s32 %s126, 1
      %p130 = scmp.eq.s32.totalorder %s19, 1
      %p131 = scmp.ne.s32.totalorder %s126, %s128
      %p132 = scmp.eq.s32.totalorder %s19, 0
      %p133 = por %p131, %p132
      %p134 = scmp.ne.s32.totalorder %s126, %s128
      %p135 = scmp.eq.s32.totalorder %s24, 1
      %p136 = por %p134, %p135
      %p137 = scmp.ne.s32.totalorder %s128, %s129
      %p138 = scmp.eq.s32.totalorder %s24, 0
      %p139 = por %p137, %p138
      %p140 = scmp.ne.s32.totalorder %s128, %s129
      %p141 = scmp.eq.s32.totalorder %s25, 1
      %p142 = por %p140, %p141
      %p144 = scmp.ne.s32.totalorder %s129, %s143
      %p145 = scmp.eq.s32.totalorder %s25, 0
      %p146 = por %p144, %p145
      %s148 = sadd.s32 %s147, 1
      %p151 = scmp.eq.s32.totalorder %s19, 1
      %p152 = scmp.ne.s32.totalorder %s147, %s149
      %p153 = scmp.eq.s32.totalorder %s19, 0
      %p154 = por %p152, %p153
      %p155 = scmp.ne.s32.totalorder %s147, %s149
      %p156 = scmp.eq.s32.totalorder %s24, 1
      %p157 = por %p155, %p156
      %p158 = scmp.ne.s32.totalorder %s149, %s150
      %p159 = scmp.eq.s32.totalorder %s24, 0
      %p160 = por %p158, %p159
      %p161 = scmp.ne.s32.totalorder %s149, %s150
      %p162 = scmp.eq.s32.totalorder %s25, 1
      %p163 = por %p161, %p162
      %p165 = scmp.ne.s32.totalorder %s150, %s164
      %p166 = scmp.eq.s32.totalorder %s25, 0
      %p167 = por %p165, %p166
      %s169 = sadd.s32 %s168, 1
      %p172 = scmp.eq.s32.totalorder %s19, 1
      %p173 = scmp.ne.s32.totalorder %s168, %s170
      %p174 = scmp.eq.s32.totalorder %s19, 0
      %p175 = por %p173, %p174
      %p176 = scmp.ne.s32.totalorder %s168, %s170
      %p177 = scmp.eq.s32.totalorder %s24, 1
      %p178 = por %p176, %p177
      %p179 = scmp.ne.s32.totalorder %s170, %s171
      %p180 = scmp.eq.s32.totalorder %s24, 0
      %p181 = por %p179, %p180
      %p182 = scmp.ne.s32.totalorder %s170, %s171
      %p183 = scmp.eq.s32.totalorder %s25, 1
      %p184 = por %p182, %p183
      %p186 = scmp.ne.s32.totalorder %s171, %s185
      %p187 = scmp.eq.s32.totalorder %s25, 0
      %p188 = por %p186, %p187
      %s190 = sadd.s32 %s189, 1
      %p193 = scmp.eq.s32.totalorder %s19, 1
      %p194 = scmp.ne.s32.totalorder %s189, %s191
      %p195 = scmp.eq.s32.totalorder %s19, 0
      %p196 = por %p194, %p195
      %p197 = scmp.ne.s32.totalorder %s189, %s191
      %p198 = scmp.eq.s32.totalorder %s24, 1
      %p199 = por %p197, %p198
      %p200 = scmp.ne.s32.totalorder %s191, %s192
      %p201 = scmp.eq.s32.totalorder %s24, 0
      %p202 = por %p200, %p201
      %p203 = scmp.ne.s32.totalorder %s191, %s192
      %p204 = scmp.eq.s32.totalorder %s25, 1
      %p205 = por %p203, %p204
      %p207 = scmp.ne.s32.totalorder %s192, %s206
      %p208 = scmp.eq.s32.totalorder %s25, 0
      %p209 = por %p207, %p208
      %s211 = sadd.s32 %s210, 1
      %p214 = scmp.eq.s32.totalorder %s19, 1
      %p215 = scmp.ne.s32.totalorder %s210, %s212
      %p216 = scmp.eq.s32.totalorder %s19, 0
      %p217 = por %p215, %p216
      %p218 = scmp.ne.s32.totalorder %s210, %s212
      %p219 = scmp.eq.s32.totalorder %s24, 1
      %p220 = por %p218, %p219
      %p221 = scmp.ne.s32.totalorder %s212, %s213
      %p222 = scmp.eq.s32.totalorder %s24, 0
      %p223 = por %p221, %p222
      %p224 = scmp.ne.s32.totalorder %s212, %s213
      %p225 = scmp.eq.s32.totalorder %s25, 1
      %p226 = por %p224, %p225
      %p228 = scmp.ne.s32.totalorder %s213, %s227
      %p229 = scmp.eq.s32.totalorder %s25, 0
      %p230 = por %p228, %p229
      %s232 = sadd.s32 %s231, 1
      %p235 = scmp.eq.s32.totalorder %s19, 1
      %p236 = scmp.ne.s32.totalorder %s231, %s233
      %p237 = scmp.eq.s32.totalorder %s19, 0
      %p238 = por %p236, %p237
      %p239 = scmp.ne.s32.totalorder %s231, %s233
      %p240 = scmp.eq.s32.totalorder %s24, 1
      %p241 = por %p239, %p240
      %p242 = scmp.ne.s32.totalorder %s233, %s234
      %p243 = scmp.eq.s32.totalorder %s24, 0
      %p244 = por %p242, %p243
      %p245 = scmp.ne.s32.totalorder %s233, %s234
      %p246 = scmp.eq.s32.totalorder %s25, 1
      %p247 = por %p245, %p246
      %p249 = scmp.ne.s32.totalorder %s234, %s248
      %p250 = scmp.eq.s32.totalorder %s25, 0
      %p251 = por %p249, %p250
      %s252 = ssub.s32 %s19, %s26
      %p253 = scmp.eq.s32.totalorder %s252, 0
      %s255 = sadd.s32 %s254, 1
      %s256 = scalar_select %p253, %s254, %s255
      %p259 = pneg %p253
      %p260 = scmp.eq.s32.totalorder %s19, 1
      %p261 = por %p259, %p260
      %p262 = scmp.ne.s32.totalorder %s254, %s257
      %p263 = scmp.eq.s32.totalorder %s19, 0
      %p264 = por %p262, %p263
      %p265 = scmp.ne.s32.totalorder %s254, %s257
      %p266 = scmp.eq.s32.totalorder %s24, 1
      %p267 = por %p265, %p266
      %p268 = scmp.ne.s32.totalorder %s257, %s258
      %p269 = scmp.eq.s32.totalorder %s24, 0
      %p270 = por %p268, %p269
      %p271 = scmp.ne.s32.totalorder %s257, %s258
      %p272 = scmp.eq.s32.totalorder %s25, 1
      %p273 = por %p271, %p272
      %p275 = scmp.ne.s32.totalorder %s258, %s274
      %p276 = scmp.eq.s32.totalorder %s25, 0
      %p277 = por %p275, %p276
      %p278 = scmp.le.s32.totalorder 1, %s19
      %p279 = scmp.lt.s32.totalorder %s19, 3
      %p280 = pnand %p278, %p279
      %p281 = pneg %p280
      // Predicated region
      $region9: #{tpu_custom_call.1} parent=5 // pred_check
        _
      $region10: #{tpu_custom_call.1} parent=5 // pred_check_branch
        %283 = sbr.rel (%p280) target = $region12
      $region11: #{tpu_custom_call.1} parent=5 // pred_region
        %s284 = ssub.s32 %s19, 1
        // Predicated region
        $region13: #{tpu_custom_call.1} parent=11 // pred_check
          %p285 = pneg %p118
        $region14: #{tpu_custom_call.1} parent=11 // pred_check_branch
          %287 = sbr.rel (%p285) target = $region16
        $region15: #{tpu_custom_call.1} parent=11 // pred_region
          _
        $region16: #{tpu_custom_call.1} parent=11 // pred_fallthru
          _
        // Predicated region
        $region17: #{tpu_custom_call.1} parent=11 // pred_check
          %p288 = pneg %p139
        $region18: #{tpu_custom_call.1} parent=11 // pred_check_branch
          %290 = sbr.rel (%p288) target = $region20
        $region19: #{tpu_custom_call.1} parent=11 // pred_region
          _
        $region20: #{tpu_custom_call.1} parent=11 // pred_fallthru
          _
        // Predicated region
        $region21: #{tpu_custom_call.1} parent=11 // pred_check
          %p291 = pneg %p160
        $region22: #{tpu_custom_call.1} parent=11 // pred_check_branch
          %293 = sbr.rel (%p291) target = $region24
        $region23: #{tpu_custom_call.1} parent=11 // pred_region
          _
        $region24: #{tpu_custom_call.1} parent=11 // pred_fallthru
          _
        // Predicated region
        $region25: #{tpu_custom_call.1} parent=11 // pred_check
          %p294 = pneg %p181
        $region26: #{tpu_custom_call.1} parent=11 // pred_check_branch
          %296 = sbr.rel (%p294) target = $region28
        $region27: #{tpu_custom_call.1} parent=11 // pred_region
          _
        $region28: #{tpu_custom_call.1} parent=11 // pred_fallthru
          _
        // Predicated region
        $region29: #{tpu_custom_call.1} parent=11 // pred_check
          %p297 = pneg %p202
        $region30: #{tpu_custom_call.1} parent=11 // pred_check_branch
          %299 = sbr.rel (%p297) target = $region32
        $region31: #{tpu_custom_call.1} parent=11 // pred_region
          _
        $region32: #{tpu_custom_call.1} parent=11 // pred_fallthru
          _
        // Predicated region
        $region33: #{tpu_custom_call.1} parent=11 // pred_check
          %p300 = pneg %p223
        $region34: #{tpu_custom_call.1} parent=11 // pred_check_branch
          %302 = sbr.rel (%p300) target = $region36
        $region35: #{tpu_custom_call.1} parent=11 // pred_region
          _
        $region36: #{tpu_custom_call.1} parent=11 // pred_fallthru
          _
        // Predicated region
        $region37: #{tpu_custom_call.1} parent=11 // pred_check
          %p303 = pneg %p244
        $region38: #{tpu_custom_call.1} parent=11 // pred_check_branch
          %305 = sbr.rel (%p303) target = $region40
        $region39: #{tpu_custom_call.1} parent=11 // pred_region
          _
        $region40: #{tpu_custom_call.1} parent=11 // pred_fallthru
          _
      $region12: #{tpu_custom_call.1} parent=5 // pred_fallthru
        _
      %p306 = scmp.lt.s32.totalorder %s19, 2
      // Predicated region
      $region41: #{tpu_custom_call.1} parent=5 // pred_check
        %p307 = pneg %p306
      $region42: #{tpu_custom_call.1} parent=5 // pred_check_branch
        %309 = sbr.rel (%p307) target = $region44
      $region43: #{tpu_custom_call.1} parent=5 // pred_region
        // Predicated region
        $region45: #{tpu_custom_call.1} parent=43 // pred_check
          %p310 = pneg %p39
        $region46: #{tpu_custom_call.1} parent=43 // pred_check_branch
          %312 = sbr.rel (%p310) target = $region48
        $region47: #{tpu_custom_call.1} parent=43 // pred_region
          %s313 = smul.u32 32, %s19
          %s314 = ssub.s32 63, %s313
          %p315 = scmp.lt.s32.totalorder %s314, 32
          %s316 = scalar_select %p315, %s314, 32
          %s317 = smul.u32 64, %s316
          %p318 = scmp.lt.s32.totalorder %s313, 62
          %s319 = scalar_select %p318, %s313, 62
          %s320 = smul.addr %s319, 4
          %s321 = scalar_lea.vmem %s0, %s320
          %s322 = smul.u32 32, %s19
          %s323 = ssub.s32 63, %s322
          %p324 = scmp.lt.s32.totalorder %s323, 32
          %s325 = scalar_select %p324, %s323, 32
          %s326 = smul.u32 64, %s325
        $region48: #{tpu_custom_call.1} parent=43 // pred_fallthru
          _
        // Predicated region
        $region49: #{tpu_custom_call.1} parent=43 // pred_check
          %p327 = pneg %p65
        $region50: #{tpu_custom_call.1} parent=43 // pred_check_branch
          %329 = sbr.rel (%p327) target = $region52
        $region51: #{tpu_custom_call.1} parent=43 // pred_region
          %s330 = smul.u32 32, %s19
          %s331 = ssub.s32 63, %s330
          %p332 = scmp.lt.s32.totalorder %s331, 32
          %s333 = scalar_select %p332, %s331, 32
          %s334 = smul.u32 128, %s333
          %p335 = scmp.lt.s32.totalorder %s330, 62
          %s336 = scalar_select %p335, %s330, 62
          %s337 = smul.addr %s336, 8
          %s338 = scalar_lea.vmem %s1, %s337
          %s339 = smul.u32 32, %s19
          %s340 = ssub.s32 63, %s339
          %p341 = scmp.lt.s32.totalorder %s340, 32
          %s342 = scalar_select %p341, %s340, 32
          %s343 = smul.u32 128, %s342
        $region52: #{tpu_custom_call.1} parent=43 // pred_fallthru
          _
        // Predicated region
        $region53: #{tpu_custom_call.1} parent=43 // pred_check
          %p344 = pneg %p91
        $region54: #{tpu_custom_call.1} parent=43 // pred_check_branch
          %346 = sbr.rel (%p344) target = $region56
        $region55: #{tpu_custom_call.1} parent=43 // pred_region
          %s347 = smul.u32 32, %s19
          %s348 = ssub.s32 63, %s347
          %p349 = scmp.lt.s32.totalorder %s348, 32
          %s350 = scalar_select %p349, %s348, 32
          %s351 = smul.u32 128, %s350
          %p352 = scmp.lt.s32.totalorder %s347, 62
          %s353 = scalar_select %p352, %s347, 62
          %s354 = smul.addr %s353, 8
          %s355 = scalar_lea.vmem %s2, %s354
          %s356 = smul.u32 32, %s19
          %s357 = ssub.s32 63, %s356
          %p358 = scmp.lt.s32.totalorder %s357, 32
          %s359 = scalar_select %p358, %s357, 32
          %s360 = smul.u32 128, %s359
        $region56: #{tpu_custom_call.1} parent=43 // pred_fallthru
          _
      $region44: #{tpu_custom_call.1} parent=5 // pred_fallthru
        _
      %p361 = scmp.le.s32.totalorder 1, %s19
      %p362 = scmp.lt.s32.totalorder %s19, 3
      %p363 = pnand %p361, %p362
      %p364 = pneg %p363
      // Predicated region
      $region57: #{tpu_custom_call.1} parent=5 // pred_check
        _
      $region58: #{tpu_custom_call.1} parent=5 // pred_check_branch
        %366 = sbr.rel (%p363) target = $region60
      $region59: #{tpu_custom_call.1} parent=5 // pred_region
        %s367 = ssub.s32 %s19, 1
        %s368 = smul.u32 32, %s24
        %s369 = ssub.s32 63, %s368
        %p370 = scmp.lt.s32.totalorder %s369, 32
        %s371 = scalar_select %p370, %s369, 32
        %s372 = smul.u32 64, %s371
        %p373 = scmp.lt.s32.totalorder %s368, 62
        %s374 = scalar_select %p373, %s368, 62
        %s375 = smul.addr %s374, 4
        %s376 = scalar_lea.vmem %s0, %s375
        %p377 = pneg %p45
        %p378 = pneg %p42
        %s379 = smul.u32 32, %s24
        %s380 = ssub.s32 63, %s379
        %p381 = scmp.lt.s32.totalorder %s380, 32
        %s382 = scalar_select %p381, %s380, 32
        %s383 = smul.u32 128, %s382
        %p384 = scmp.lt.s32.totalorder %s379, 62
        %s385 = scalar_select %p384, %s379, 62
        %s386 = smul.addr %s385, 8
        %s387 = scalar_lea.vmem %s1, %s386
        %p388 = pneg %p71
        %p389 = pneg %p68
        %s390 = smul.u32 32, %s24
        %s391 = ssub.s32 63, %s390
        %p392 = scmp.lt.s32.totalorder %s391, 32
        %s393 = scalar_select %p392, %s391, 32
        %s394 = smul.u32 128, %s393
        %p395 = scmp.lt.s32.totalorder %s390, 62
        %s396 = scalar_select %p395, %s390, 62
        %s397 = smul.addr %s396, 8
        %s398 = scalar_lea.vmem %s2, %s397
        %p399 = pneg %p97
        %p400 = pneg %p94
        %p401 = pneg %p118
        %p402 = pneg %p115
        %p403 = pneg %p139
        %p404 = pneg %p136
        %p405 = pneg %p160
        %p406 = pneg %p157
        %p407 = pneg %p181
        %p408 = pneg %p178
        %p409 = pneg %p202
        %p410 = pneg %p199
        %p411 = pneg %p223
        %p412 = pneg %p220
        %p413 = pneg %p244
        %p414 = pneg %p241
        %p415 = pneg %p270
        %p416 = pneg %p267
        %s417 = sand.u32 %s257, 1
        %s418 = scalar_lea.sflag [#allocation3], %s417
        %s419 = sand.u32 %s257, 1
        %s420 = smul.addr %s419, 256
        %s421 = scalar_lea.vmem [#allocation2], %s420
        %s422 = smul.u32 32, %s24
        %s423 = ssub.s32 63, %s422
        %p424 = scmp.lt.s32.totalorder %s423, 32
        %s425 = scalar_select %p424, %s423, 32
        %s426 = smul.u32 64, %s425
        %p427 = scmp.lt.s32.totalorder %s422, 62
        %s428 = scalar_select %p427, %s422, 62
        %s429 = smul.addr %s428, 4
        %s430 = scalar_lea.vmem %s0, %s429
        %s431 = smul.u32 32, %s24
        %s432 = ssub.s32 63, %s431
        %p433 = scmp.lt.s32.totalorder %s432, 32
        %s434 = scalar_select %p433, %s432, 32
        %s435 = smul.u32 64, %s434
        %s436 = smul.u32 32, %s24
        %s437 = ssub.s32 63, %s436
        %p438 = scmp.lt.s32.totalorder %s437, 32
        %s439 = scalar_select %p438, %s437, 32
        %s440 = smul.u32 128, %s439
        %p441 = scmp.lt.s32.totalorder %s436, 62
        %s442 = scalar_select %p441, %s436, 62
        %s443 = smul.addr %s442, 8
        %s444 = scalar_lea.vmem %s1, %s443
        %s445 = smul.u32 32, %s24
        %s446 = ssub.s32 63, %s445
        %p447 = scmp.lt.s32.totalorder %s446, 32
        %s448 = scalar_select %p447, %s446, 32
        %s449 = smul.u32 128, %s448
        %s450 = smul.u32 32, %s24
        %s451 = ssub.s32 63, %s450
        %p452 = scmp.lt.s32.totalorder %s451, 32
        %s453 = scalar_select %p452, %s451, 32
        %s454 = smul.u32 128, %s453
        %p455 = scmp.lt.s32.totalorder %s450, 62
        %s456 = scalar_select %p455, %s450, 62
        %s457 = smul.addr %s456, 8
        %s458 = scalar_lea.vmem %s2, %s457
        %s459 = smul.u32 32, %s24
        %s460 = ssub.s32 63, %s459
        %p461 = scmp.lt.s32.totalorder %s460, 32
        %s462 = scalar_select %p461, %s460, 32
        %s463 = smul.u32 128, %s462
        %s464 = smul.u32 32, %s24
        %s465 = ssub.s32 63, %s464
        %p466 = scmp.lt.s32.totalorder %s465, 32
        %s467 = scalar_select %p466, %s465, 32
        %s468 = smul.u32 128, %s467
        %v470 = vld [vmem:[%s444] sm:$0xff]
        %v471 = vld [vmem:[%s444 + $0x8] sm:$0xff]
        %v472 = vld [vmem:[%s444 + $0x10] sm:$0xff]
        %v473 = vld [vmem:[%s444 + $0x18] sm:$0xff]
        %v474 = vld [vmem:[%s444 + $0x20] sm:$0xff]
        %v475 = vld [vmem:[%s444 + $0x28] sm:$0xff]
        %v476 = vld [vmem:[%s444 + $0x30] sm:$0xff]
        %v477 = vld [vmem:[%s444 + $0x38] sm:$0xff]
        %v478 = vld [vmem:[%s444 + $0x40] sm:$0xff]
        %v479 = vld [vmem:[%s444 + $0x48] sm:$0xff]
        %v480 = vld [vmem:[%s444 + $0x50] sm:$0xff]
        %v481 = vld [vmem:[%s444 + $0x58] sm:$0xff]
        %v482 = vld [vmem:[%s444 + $0x60] sm:$0xff]
        %v483 = vld [vmem:[%s444 + $0x68] sm:$0xff]
        %v484 = vld [vmem:[%s444 + $0x70] sm:$0xff]
        %v485 = vld [vmem:[%s444 + $0x78] sm:$0xff]
        %v486 = vld [vmem:[%s444 + $0x80] sm:$0xff]
        %v487 = vld [vmem:[%s444 + $0x88] sm:$0xff]
        %v488 = vld [vmem:[%s444 + $0x90] sm:$0xff]
        %v489 = vld [vmem:[%s444 + $0x98] sm:$0xff]
        %v490 = vld [vmem:[%s444 + $0xa0] sm:$0xff]
        %v491 = vld [vmem:[%s444 + $0xa8] sm:$0xff]
        %v492 = vld [vmem:[%s444 + $0xb0] sm:$0xff]
        %v493 = vld [vmem:[%s444 + $0xb8] sm:$0xff]
        %v494 = vld [vmem:[%s444 + $0xc0] sm:$0xff]
        %v495 = vld [vmem:[%s444 + $0xc8] sm:$0xff]
        %v496 = vld [vmem:[%s444 + $0xd0] sm:$0xff]
        %v497 = vld [vmem:[%s444 + $0xd8] sm:$0xff]
        %v498 = vld [vmem:[%s444 + $0xe0] sm:$0xff]
        %v499 = vld [vmem:[%s444 + $0xe8] sm:$0xff]
        %v500 = vld [vmem:[%s444 + $0xf0] sm:$0xff]
        %v501 = vld [vmem:[%s444 + $0xf8] sm:$0xff]
        %v502 = vpack.c.bf16 %v471, %v470
        %v503 = vpack.c.bf16 %v473, %v472
        %v504 = vpack.c.bf16 %v475, %v474
        %v505 = vpack.c.bf16 %v477, %v476
        %v506 = vpack.c.bf16 %v479, %v478
        %v507 = vpack.c.bf16 %v481, %v480
        %v508 = vpack.c.bf16 %v483, %v482
        %v509 = vpack.c.bf16 %v485, %v484
        %v510 = vpack.c.bf16 %v487, %v486
        %v511 = vpack.c.bf16 %v489, %v488
        %v512 = vpack.c.bf16 %v491, %v490
        %v513 = vpack.c.bf16 %v493, %v492
        %v514 = vpack.c.bf16 %v495, %v494
        %v515 = vpack.c.bf16 %v497, %v496
        %v516 = vpack.c.bf16 %v499, %v498
        %v517 = vpack.c.bf16 %v501, %v500
        %v518 = vld [vmem:[%s430] sm:$0xf]
        %v519 = vld [vmem:[%s430 + $0x4] sm:$0xf]
        %v520 = vld [vmem:[%s430 + $0x8] sm:$0xf]
        %v521 = vld [vmem:[%s430 + $0xc] sm:$0xf]
        %v522 = vld [vmem:[%s430 + $0x10] sm:$0xf]
        %v523 = vld [vmem:[%s430 + $0x14] sm:$0xf]
        %v524 = vld [vmem:[%s430 + $0x18] sm:$0xf]
        %v525 = vld [vmem:[%s430 + $0x1c] sm:$0xf]
        %v526 = vld [vmem:[%s430 + $0x20] sm:$0xf]
        %v527 = vld [vmem:[%s430 + $0x24] sm:$0xf]
        %v528 = vld [vmem:[%s430 + $0x28] sm:$0xf]
        %v529 = vld [vmem:[%s430 + $0x2c] sm:$0xf]
        %v530 = vld [vmem:[%s430 + $0x30] sm:$0xf]
        %v531 = vld [vmem:[%s430 + $0x34] sm:$0xf]
        %v532 = vld [vmem:[%s430 + $0x38] sm:$0xf]
        %v533 = vld [vmem:[%s430 + $0x3c] sm:$0xf]
        %v534 = vld [vmem:[%s430 + $0x40] sm:$0xf]
        %v535 = vld [vmem:[%s430 + $0x44] sm:$0xf]
        %v536 = vld [vmem:[%s430 + $0x48] sm:$0xf]
        %v537 = vld [vmem:[%s430 + $0x4c] sm:$0xf]
        %v538 = vld [vmem:[%s430 + $0x50] sm:$0xf]
        %v539 = vld [vmem:[%s430 + $0x54] sm:$0xf]
        %v540 = vld [vmem:[%s430 + $0x58] sm:$0xf]
        %v541 = vld [vmem:[%s430 + $0x5c] sm:$0xf]
        %v542 = vld [vmem:[%s430 + $0x60] sm:$0xf]
        %v543 = vld [vmem:[%s430 + $0x64] sm:$0xf]
        %v544 = vld [vmem:[%s430 + $0x68] sm:$0xf]
        %v545 = vld [vmem:[%s430 + $0x6c] sm:$0xf]
        %v546 = vld [vmem:[%s430 + $0x70] sm:$0xf]
        %v547 = vld [vmem:[%s430 + $0x74] sm:$0xf]
        %v548 = vld [vmem:[%s430 + $0x78] sm:$0xf]
        %v549 = vld [vmem:[%s430 + $0x7c] sm:$0xf]
        %v550 = vld [vmem:[%s4] sm:$0xff]
        %v551 = vld [vmem:[%s4 + $0x8] sm:$0xff]
        %v552 = vld [vmem:[%s4 + $0x10] sm:$0xff]
        %v553 = vld [vmem:[%s4 + $0x18] sm:$0xff]
        %v554 = vld [vmem:[%s4 + $0x20] sm:$0xff]
        %v555 = vld [vmem:[%s4 + $0x28] sm:$0xff]
        %v556 = vld [vmem:[%s4 + $0x30] sm:$0xff]
        %v557 = vld [vmem:[%s4 + $0x38] sm:$0xff]
        %v558 = vld [vmem:[%s4 + $0x40] sm:$0xff]
        %v559 = vld [vmem:[%s4 + $0x48] sm:$0xff]
        %v560 = vld [vmem:[%s4 + $0x50] sm:$0xff]
        %v561 = vld [vmem:[%s4 + $0x58] sm:$0xff]
        %v562 = vld [vmem:[%s4 + $0x60] sm:$0xff]
        %v563 = vld [vmem:[%s4 + $0x68] sm:$0xff]
        %v564 = vld [vmem:[%s4 + $0x70] sm:$0xff]
        %v565 = vld [vmem:[%s4 + $0x78] sm:$0xff]
        %v566 = vld [vmem:[%s3] sm:$0xff]
        %v567 = vld [vmem:[%s3 + $0x8] sm:$0xff]
        %v568 = vld [vmem:[%s3 + $0x10] sm:$0xff]
        %v569 = vld [vmem:[%s3 + $0x18] sm:$0xff]
        %v570 = vld [vmem:[%s3 + $0x20] sm:$0xff]
        %v571 = vld [vmem:[%s3 + $0x28] sm:$0xff]
        %v572 = vld [vmem:[%s3 + $0x30] sm:$0xff]
        %v573 = vld [vmem:[%s3 + $0x38] sm:$0xff]
        %v606 = vunpack.c.l.b16 %v518
        %v607 = vunpack.c.l.b16 %v519
        %v608 = vunpack.c.l.b16 %v520
        %v609 = vunpack.c.l.b16 %v521
        %v610 = vunpack.c.l.b16 %v522
        %v611 = vunpack.c.l.b16 %v523
        %v612 = vunpack.c.l.b16 %v524
        %v613 = vunpack.c.l.b16 %v525
        %v614 = vunpack.c.l.b16 %v526
        %v615 = vunpack.c.l.b16 %v527
        %v616 = vunpack.c.l.b16 %v528
        %v617 = vunpack.c.l.b16 %v529
        %v618 = vunpack.c.l.b16 %v530
        %v619 = vunpack.c.l.b16 %v531
        %v620 = vunpack.c.l.b16 %v532
        %v621 = vunpack.c.l.b16 %v533
        %v622 = vunpack.c.l.b16 %v534
        %v623 = vunpack.c.l.b16 %v535
        %v624 = vunpack.c.l.b16 %v536
        %v625 = vunpack.c.l.b16 %v537
        %v626 = vunpack.c.l.b16 %v538
        %v627 = vunpack.c.l.b16 %v539
        %v628 = vunpack.c.l.b16 %v540
        %v629 = vunpack.c.l.b16 %v541
        %v630 = vunpack.c.l.b16 %v542
        %v631 = vunpack.c.l.b16 %v543
        %v632 = vunpack.c.l.b16 %v544
        %v633 = vunpack.c.l.b16 %v545
        %v634 = vunpack.c.l.b16 %v546
        %v635 = vunpack.c.l.b16 %v547
        %v636 = vunpack.c.l.b16 %v548
        %v637 = vunpack.c.l.b16 %v549
        %v638 = vpack.c.b16 %v607, %v606
        %v639 = vpack.c.b16 %v609, %v608
        %v640 = vpack.c.b16 %v611, %v610
        %v641 = vpack.c.b16 %v613, %v612
        %v642 = vpack.c.b16 %v615, %v614
        %v643 = vpack.c.b16 %v617, %v616
        %v644 = vpack.c.b16 %v619, %v618
        %v645 = vpack.c.b16 %v621, %v620
        %v646 = vpack.c.b16 %v623, %v622
        %v647 = vpack.c.b16 %v625, %v624
        %v648 = vpack.c.b16 %v627, %v626
        %v649 = vpack.c.b16 %v629, %v628
        %v650 = vpack.c.b16 %v631, %v630
        %v651 = vpack.c.b16 %v633, %v632
        %v652 = vpack.c.b16 %v635, %v634
        %v653 = vpack.c.b16 %v637, %v636
        %v662 = vunpack.c.l.b16 %v566
        %v663 = vunpack.c.h.b16 %v566
        %v664 = vunpack.c.l.b16 %v567
        %v665 = vunpack.c.h.b16 %v567
        %v666 = vunpack.c.l.b16 %v568
        %v667 = vunpack.c.h.b16 %v568
        %v668 = vunpack.c.l.b16 %v569
        %v669 = vunpack.c.h.b16 %v569
        %v670 = vunpack.c.l.b16 %v570
        %v671 = vunpack.c.h.b16 %v570
        %v672 = vunpack.c.l.b16 %v571
        %v673 = vunpack.c.h.b16 %v571
        %v674 = vunpack.c.l.b16 %v572
        %v675 = vunpack.c.h.b16 %v572
        %v676 = vunpack.c.l.b16 %v573
        %v677 = vunpack.c.h.b16 %v573
        %v678 = vpack.c.b16 %v664, %v662
        %v679 = vpack.c.b16 %v665, %v663
        %v680 = vpack.c.b16 %v668, %v666
        %v681 = vpack.c.b16 %v669, %v667
        %v682 = vpack.c.b16 %v672, %v670
        %v683 = vpack.c.b16 %v673, %v671
        %v684 = vpack.c.b16 %v676, %v674
        %v685 = vpack.c.b16 %v677, %v675
        %vm694 = vcmask 523264
        %v696 = vsel %vm694, %v638, 0
        %v699 = vsel %vm694, %v639, 0
        %v702 = vsel %vm694, %v640, 0
        %v705 = vsel %vm694, %v641, 0
        %v708 = vsel %vm694, %v642, 0
        %v711 = vsel %vm694, %v643, 0
        %v714 = vsel %vm694, %v644, 0
        %v717 = vsel %vm694, %v645, 0
        %v720 = vsel %vm694, %v646, 0
        %v723 = vsel %vm694, %v647, 0
        %v726 = vsel %vm694, %v648, 0
        %v729 = vsel %vm694, %v649, 0
        %v732 = vsel %vm694, %v650, 0
        %v735 = vsel %vm694, %v651, 0
        %v738 = vsel %vm694, %v652, 0
        %v741 = vsel %vm694, %v653, 0
        %743 = vmatprep.subr.bf16.mxu0 0
        %744 = vmatpush1.bf16.msra.mxu0 0
        %745 = vmatprep.subr.bf16.mxu0 0
        %746 = vmatpush1.bf16.msra.mxu0 0
        %747 = vmatprep.subr.bf16.mxu0 0
        %748 = vmatpush1.bf16.msra.mxu0 0
        %749 = vmatprep.subr.bf16.mxu0 0
        %750 = vmatpush1.bf16.msra.mxu0 0
        %751 = vmatprep.subr.bf16.mxu0 %v685
        %752 = vmatpush1.bf16.msra.mxu0 %v684
        %753 = vmatprep.subr.bf16.mxu0 %v683
        %754 = vmatpush1.bf16.msra.mxu0 %v682
        %755 = vmatprep.subr.bf16.mxu0 %v681
        %756 = vmatpush1.bf16.msra.mxu0 %v680
        %757 = vmatprep.subr.bf16.mxu0 %v679
        %758 = vmatpush1.bf16.msra.mxu0 %v678
        %759 = vmatprep.subr.bf16.mxu0 0
        %760 = vmatpush2.bf16.msra.mxu0 0
        %761 = vmatprep.subr.bf16.mxu0 0
        %762 = vmatpush2.bf16.msra.mxu0 0
        %763 = vmatprep.subr.bf16.mxu0 0
        %764 = vmatpush2.bf16.msra.mxu0 0
        %765 = vmatprep.subr.bf16.mxu0 0
        %766 = vmatpush2.bf16.msra.mxu0 0
        %767 = vmatprep.subr.bf16.mxu0 0
        %768 = vmatpush2.bf16.msra.mxu0 0
        %769 = vmatprep.subr.bf16.mxu0 0
        %770 = vmatpush2.bf16.msra.mxu0 0
        %771 = vmatprep.subr.bf16.mxu0 0
        %772 = vmatpush2.bf16.msra.mxu0 0
        %773 = vmatprep.subr.bf16.mxu0 0
        %774 = vmatpush2.bf16.msra.mxu0 0
        %775 = vmatprep.mubr.bf16.mxu0 0
        %776 = vmatmul.mubr.bf16.gmra.mxu0 %v696
        %v777 = vpop.f32.mrf.mxu0
        %v778 = vadd.f32 0.0, %v777
        %v779 = vpop.f32.mrf.mxu0
        %v780 = vadd.f32 0.0, %v779
        %v781 = vpop.f32.mrf.mxu0
        %v782 = vadd.f32 0.0, %v781
        %v783 = vpop.f32.mrf.mxu0
        %v784 = vadd.f32 0.0, %v783
        %785 = vmatprep.mubr.bf16.mxu0 0
        %786 = vmatmul.mubr.bf16.gmra.mxu0 %v699
        %v787 = vpop.f32.mrf.mxu0
        %v788 = vadd.f32 0.0, %v787
        %v789 = vpop.f32.mrf.mxu0
        %v790 = vadd.f32 0.0, %v789
        %v791 = vpop.f32.mrf.mxu0
        %v792 = vadd.f32 0.0, %v791
        %v793 = vpop.f32.mrf.mxu0
        %v794 = vadd.f32 0.0, %v793
        %795 = vmatprep.mubr.bf16.mxu0 0
        %796 = vmatmul.mubr.bf16.gmra.mxu0 %v702
        %v797 = vpop.f32.mrf.mxu0
        %v798 = vadd.f32 0.0, %v797
        %v799 = vpop.f32.mrf.mxu0
        %v800 = vadd.f32 0.0, %v799
        %v801 = vpop.f32.mrf.mxu0
        %v802 = vadd.f32 0.0, %v801
        %v803 = vpop.f32.mrf.mxu0
        %v804 = vadd.f32 0.0, %v803
        %805 = vmatprep.mubr.bf16.mxu0 0
        %806 = vmatmul.mubr.bf16.gmra.mxu0 %v705
        %v807 = vpop.f32.mrf.mxu0
        %v808 = vadd.f32 0.0, %v807
        %v809 = vpop.f32.mrf.mxu0
        %v810 = vadd.f32 0.0, %v809
        %v811 = vpop.f32.mrf.mxu0
        %v812 = vadd.f32 0.0, %v811
        %v813 = vpop.f32.mrf.mxu0
        %v814 = vadd.f32 0.0, %v813
        %815 = vmatprep.mubr.bf16.mxu0 0
        %816 = vmatmul.mubr.bf16.gmra.mxu0 %v708
        %v817 = vpop.f32.mrf.mxu0
        %v818 = vadd.f32 0.0, %v817
        %v819 = vpop.f32.mrf.mxu0
        %v820 = vadd.f32 0.0, %v819
        %v821 = vpop.f32.mrf.mxu0
        %v822 = vadd.f32 0.0, %v821
        %v823 = vpop.f32.mrf.mxu0
        %v824 = vadd.f32 0.0, %v823
        %825 = vmatprep.mubr.bf16.mxu0 0
        %826 = vmatmul.mubr.bf16.gmra.mxu0 %v711
        %v827 = vpop.f32.mrf.mxu0
        %v828 = vadd.f32 0.0, %v827
        %v829 = vpop.f32.mrf.mxu0
        %v830 = vadd.f32 0.0, %v829
        %v831 = vpop.f32.mrf.mxu0
        %v832 = vadd.f32 0.0, %v831
        %v833 = vpop.f32.mrf.mxu0
        %v834 = vadd.f32 0.0, %v833
        %835 = vmatprep.mubr.bf16.mxu0 0
        %836 = vmatmul.mubr.bf16.gmra.mxu0 %v714
        %v837 = vpop.f32.mrf.mxu0
        %v838 = vadd.f32 0.0, %v837
        %v839 = vpop.f32.mrf.mxu0
        %v840 = vadd.f32 0.0, %v839
        %v841 = vpop.f32.mrf.mxu0
        %v842 = vadd.f32 0.0, %v841
        %v843 = vpop.f32.mrf.mxu0
        %v844 = vadd.f32 0.0, %v843
        %845 = vmatprep.mubr.bf16.mxu0 0
        %846 = vmatmul.mubr.bf16.gmra.mxu0 %v717
        %v847 = vpop.f32.mrf.mxu0
        %v848 = vadd.f32 0.0, %v847
        %v849 = vpop.f32.mrf.mxu0
        %v850 = vadd.f32 0.0, %v849
        %v851 = vpop.f32.mrf.mxu0
        %v852 = vadd.f32 0.0, %v851
        %v853 = vpop.f32.mrf.mxu0
        %v854 = vadd.f32 0.0, %v853
        %855 = vmatprep.mubr.bf16.mxu0 0
        %856 = vmatmul.mubr.bf16.gmra.mxu0 %v720
        %v857 = vpop.f32.mrf.mxu0
        %v858 = vadd.f32 0.0, %v857
        %v859 = vpop.f32.mrf.mxu0
        %v860 = vadd.f32 0.0, %v859
        %v861 = vpop.f32.mrf.mxu0
        %v862 = vadd.f32 0.0, %v861
        %v863 = vpop.f32.mrf.mxu0
        %v864 = vadd.f32 0.0, %v863
        %865 = vmatprep.mubr.bf16.mxu0 0
        %866 = vmatmul.mubr.bf16.gmra.mxu0 %v723
        %v867 = vpop.f32.mrf.mxu0
        %v868 = vadd.f32 0.0, %v867
        %v869 = vpop.f32.mrf.mxu0
        %v870 = vadd.f32 0.0, %v869
        %v871 = vpop.f32.mrf.mxu0
        %v872 = vadd.f32 0.0, %v871
        %v873 = vpop.f32.mrf.mxu0
        %v874 = vadd.f32 0.0, %v873
        %875 = vmatprep.mubr.bf16.mxu0 0
        %876 = vmatmul.mubr.bf16.gmra.mxu0 %v726
        %v877 = vpop.f32.mrf.mxu0
        %v878 = vadd.f32 0.0, %v877
        %v879 = vpop.f32.mrf.mxu0
        %v880 = vadd.f32 0.0, %v879
        %v881 = vpop.f32.mrf.mxu0
        %v882 = vadd.f32 0.0, %v881
        %v883 = vpop.f32.mrf.mxu0
        %v884 = vadd.f32 0.0, %v883
        %885 = vmatprep.mubr.bf16.mxu0 0
        %886 = vmatmul.mubr.bf16.gmra.mxu0 %v729
        %v887 = vpop.f32.mrf.mxu0
        %v888 = vadd.f32 0.0, %v887
        %v889 = vpop.f32.mrf.mxu0
        %v890 = vadd.f32 0.0, %v889
        %v891 = vpop.f32.mrf.mxu0
        %v892 = vadd.f32 0.0, %v891
        %v893 = vpop.f32.mrf.mxu0
        %v894 = vadd.f32 0.0, %v893
        %895 = vmatprep.mubr.bf16.mxu0 0
        %896 = vmatmul.mubr.bf16.gmra.mxu0 %v732
        %v897 = vpop.f32.mrf.mxu0
        %v898 = vadd.f32 0.0, %v897
        %v899 = vpop.f32.mrf.mxu0
        %v900 = vadd.f32 0.0, %v899
        %v901 = vpop.f32.mrf.mxu0
        %v902 = vadd.f32 0.0, %v901
        %v903 = vpop.f32.mrf.mxu0
        %v904 = vadd.f32 0.0, %v903
        %905 = vmatprep.mubr.bf16.mxu0 0
        %906 = vmatmul.mubr.bf16.gmra.mxu0 %v735
        %v907 = vpop.f32.mrf.mxu0
        %v908 = vadd.f32 0.0, %v907
        %v909 = vpop.f32.mrf.mxu0
        %v910 = vadd.f32 0.0, %v909
        %v911 = vpop.f32.mrf.mxu0
        %v912 = vadd.f32 0.0, %v911
        %v913 = vpop.f32.mrf.mxu0
        %v914 = vadd.f32 0.0, %v913
        %915 = vmatprep.mubr.bf16.mxu0 0
        %916 = vmatmul.mubr.bf16.gmra.mxu0 %v738
        %v917 = vpop.f32.mrf.mxu0
        %v918 = vadd.f32 0.0, %v917
        %v919 = vpop.f32.mrf.mxu0
        %v920 = vadd.f32 0.0, %v919
        %v921 = vpop.f32.mrf.mxu0
        %v922 = vadd.f32 0.0, %v921
        %v923 = vpop.f32.mrf.mxu0
        %v924 = vadd.f32 0.0, %v923
        %925 = vmatprep.mubr.bf16.mxu0 0
        %926 = vmatmul.mubr.bf16.gmra.mxu0 %v741
        %v927 = vpop.f32.mrf.mxu0
        %v928 = vadd.f32 0.0, %v927
        %v929 = vpop.f32.mrf.mxu0
        %v930 = vadd.f32 0.0, %v929
        %v931 = vpop.f32.mrf.mxu0
        %v932 = vadd.f32 0.0, %v931
        %v933 = vpop.f32.mrf.mxu0
        %v934 = vadd.f32 0.0, %v933
        %935 = vdwg.mxu0
        %v952 = vunpack.c.l.b16 %v550
        %v953 = vunpack.c.h.b16 %v550
        %v954 = vunpack.c.l.b16 %v551
        %v955 = vunpack.c.h.b16 %v551
        %v956 = vunpack.c.l.b16 %v552
        %v957 = vunpack.c.h.b16 %v552
        %v958 = vunpack.c.l.b16 %v553
        %v959 = vunpack.c.h.b16 %v553
        %v960 = vunpack.c.l.b16 %v554
        %v961 = vunpack.c.h.b16 %v554
        %v962 = vunpack.c.l.b16 %v555
        %v963 = vunpack.c.h.b16 %v555
        %v964 = vunpack.c.l.b16 %v556
        %v965 = vunpack.c.h.b16 %v556
        %v966 = vunpack.c.l.b16 %v557
        %v967 = vunpack.c.h.b16 %v557
        %v968 = vunpack.c.l.b16 %v558
        %v969 = vunpack.c.h.b16 %v558
        %v970 = vunpack.c.l.b16 %v559
        %v971 = vunpack.c.h.b16 %v559
        %v972 = vunpack.c.l.b16 %v560
        %v973 = vunpack.c.h.b16 %v560
        %v974 = vunpack.c.l.b16 %v561
        %v975 = vunpack.c.h.b16 %v561
        %v976 = vunpack.c.l.b16 %v562
        %v977 = vunpack.c.h.b16 %v562
        %v978 = vunpack.c.l.b16 %v563
        %v979 = vunpack.c.h.b16 %v563
        %v980 = vunpack.c.l.b16 %v564
        %v981 = vunpack.c.h.b16 %v564
        %v982 = vunpack.c.l.b16 %v565
        %v983 = vunpack.c.h.b16 %v565
        %v984 = vpack.c.b16 %v954, %v952
        %v985 = vpack.c.b16 %v955, %v953
        %v986 = vpack.c.b16 %v958, %v956
        %v987 = vpack.c.b16 %v959, %v957
        %v988 = vpack.c.b16 %v962, %v960
        %v989 = vpack.c.b16 %v963, %v961
        %v990 = vpack.c.b16 %v966, %v964
        %v991 = vpack.c.b16 %v967, %v965
        %v992 = vpack.c.b16 %v970, %v968
        %v993 = vpack.c.b16 %v971, %v969
        %v994 = vpack.c.b16 %v974, %v972
        %v995 = vpack.c.b16 %v975, %v973
        %v996 = vpack.c.b16 %v978, %v976
        %v997 = vpack.c.b16 %v979, %v977
        %v998 = vpack.c.b16 %v982, %v980
        %v999 = vpack.c.b16 %v983, %v981
        %1016 = vmatprep.subr.bf16.mxu0 %v999
        %1017 = vmatpush1.bf16.msra.mxu0 %v998
        %1018 = vmatprep.subr.bf16.mxu0 %v997
        %1019 = vmatpush1.bf16.msra.mxu0 %v996
        %1020 = vmatprep.subr.bf16.mxu0 %v995
        %1021 = vmatpush1.bf16.msra.mxu0 %v994
        %1022 = vmatprep.subr.bf16.mxu0 %v993
        %1023 = vmatpush1.bf16.msra.mxu0 %v992
        %1024 = vmatprep.subr.bf16.mxu0 %v991
        %1025 = vmatpush1.bf16.msra.mxu0 %v990
        %1026 = vmatprep.subr.bf16.mxu0 %v989
        %1027 = vmatpush1.bf16.msra.mxu0 %v988
        %1028 = vmatprep.subr.bf16.mxu0 %v987
        %1029 = vmatpush1.bf16.msra.mxu0 %v986
        %1030 = vmatprep.subr.bf16.mxu0 %v985
        %1031 = vmatpush1.bf16.msra.mxu0 %v984
        %1032 = vmatprep.subr.bf16.mxu0 0
        %1033 = vmatpush2.bf16.msra.mxu0 0
        %1034 = vmatprep.subr.bf16.mxu0 0
        %1035 = vmatpush2.bf16.msra.mxu0 0
        %1036 = vmatprep.subr.bf16.mxu0 0
        %1037 = vmatpush2.bf16.msra.mxu0 0
        %1038 = vmatprep.subr.bf16.mxu0 0
        %1039 = vmatpush2.bf16.msra.mxu0 0
        %1040 = vmatprep.subr.bf16.mxu0 0
        %1041 = vmatpush2.bf16.msra.mxu0 0
        %1042 = vmatprep.subr.bf16.mxu0 0
        %1043 = vmatpush2.bf16.msra.mxu0 0
        %1044 = vmatprep.subr.bf16.mxu0 0
        %1045 = vmatpush2.bf16.msra.mxu0 0
        %1046 = vmatprep.subr.bf16.mxu0 0
        %1047 = vmatpush2.bf16.msra.mxu0 0
        %1048 = vmatprep.mubr.bf16.mxu0 0
        %1049 = vmatmul.mubr.bf16.gmra.mxu0 %v502
        %v1050 = vpop.f32.mrf.mxu0
        %v1051 = vadd.f32 %v778, %v1050
        %v1052 = vpop.f32.mrf.mxu0
        %v1053 = vadd.f32 %v780, %v1052
        %v1054 = vpop.f32.mrf.mxu0
        %v1055 = vadd.f32 %v782, %v1054
        %v1056 = vpop.f32.mrf.mxu0
        %v1057 = vadd.f32 %v784, %v1056
        %1058 = vmatprep.mubr.bf16.mxu0 0
        %1059 = vmatmul.mubr.bf16.gmra.mxu0 %v503
        %v1060 = vpop.f32.mrf.mxu0
        %v1061 = vadd.f32 %v788, %v1060
        %v1062 = vpop.f32.mrf.mxu0
        %v1063 = vadd.f32 %v790, %v1062
        %v1064 = vpop.f32.mrf.mxu0
        %v1065 = vadd.f32 %v792, %v1064
        %v1066 = vpop.f32.mrf.mxu0
        %v1067 = vadd.f32 %v794, %v1066
        %1068 = vmatprep.mubr.bf16.mxu0 0
        %1069 = vmatmul.mubr.bf16.gmra.mxu0 %v504
        %v1070 = vpop.f32.mrf.mxu0
        %v1071 = vadd.f32 %v798, %v1070
        %v1072 = vpop.f32.mrf.mxu0
        %v1073 = vadd.f32 %v800, %v1072
        %v1074 = vpop.f32.mrf.mxu0
        %v1075 = vadd.f32 %v802, %v1074
        %v1076 = vpop.f32.mrf.mxu0
        %v1077 = vadd.f32 %v804, %v1076
        %1078 = vmatprep.mubr.bf16.mxu0 0
        %1079 = vmatmul.mubr.bf16.gmra.mxu0 %v505
        %v1080 = vpop.f32.mrf.mxu0
        %v1081 = vadd.f32 %v808, %v1080
        %v1082 = vpop.f32.mrf.mxu0
        %v1083 = vadd.f32 %v810, %v1082
        %v1084 = vpop.f32.mrf.mxu0
        %v1085 = vadd.f32 %v812, %v1084
        %v1086 = vpop.f32.mrf.mxu0
        %v1087 = vadd.f32 %v814, %v1086
        %1088 = vmatprep.mubr.bf16.mxu0 0
        %1089 = vmatmul.mubr.bf16.gmra.mxu0 %v506
        %v1090 = vpop.f32.mrf.mxu0
        %v1091 = vadd.f32 %v818, %v1090
        %v1092 = vpop.f32.mrf.mxu0
        %v1093 = vadd.f32 %v820, %v1092
        %v1094 = vpop.f32.mrf.mxu0
        %v1095 = vadd.f32 %v822, %v1094
        %v1096 = vpop.f32.mrf.mxu0
        %v1097 = vadd.f32 %v824, %v1096
        %1098 = vmatprep.mubr.bf16.mxu0 0
        %1099 = vmatmul.mubr.bf16.gmra.mxu0 %v507
        %v1100 = vpop.f32.mrf.mxu0
        %v1101 = vadd.f32 %v828, %v1100
        %v1102 = vpop.f32.mrf.mxu0
        %v1103 = vadd.f32 %v830, %v1102
        %v1104 = vpop.f32.mrf.mxu0
        %v1105 = vadd.f32 %v832, %v1104
        %v1106 = vpop.f32.mrf.mxu0
        %v1107 = vadd.f32 %v834, %v1106
        %1108 = vmatprep.mubr.bf16.mxu0 0
        %1109 = vmatmul.mubr.bf16.gmra.mxu0 %v508
        %v1110 = vpop.f32.mrf.mxu0
        %v1111 = vadd.f32 %v838, %v1110
        %v1112 = vpop.f32.mrf.mxu0
        %v1113 = vadd.f32 %v840, %v1112
        %v1114 = vpop.f32.mrf.mxu0
        %v1115 = vadd.f32 %v842, %v1114
        %v1116 = vpop.f32.mrf.mxu0
        %v1117 = vadd.f32 %v844, %v1116
        %1118 = vmatprep.mubr.bf16.mxu0 0
        %1119 = vmatmul.mubr.bf16.gmra.mxu0 %v509
        %v1120 = vpop.f32.mrf.mxu0
        %v1121 = vadd.f32 %v848, %v1120
        %v1122 = vpop.f32.mrf.mxu0
        %v1123 = vadd.f32 %v850, %v1122
        %v1124 = vpop.f32.mrf.mxu0
        %v1125 = vadd.f32 %v852, %v1124
        %v1126 = vpop.f32.mrf.mxu0
        %v1127 = vadd.f32 %v854, %v1126
        %1128 = vmatprep.mubr.bf16.mxu0 0
        %1129 = vmatmul.mubr.bf16.gmra.mxu0 %v510
        %v1130 = vpop.f32.mrf.mxu0
        %v1131 = vadd.f32 %v858, %v1130
        %v1132 = vpop.f32.mrf.mxu0
        %v1133 = vadd.f32 %v860, %v1132
        %v1134 = vpop.f32.mrf.mxu0
        %v1135 = vadd.f32 %v862, %v1134
        %v1136 = vpop.f32.mrf.mxu0
        %v1137 = vadd.f32 %v864, %v1136
        %1138 = vmatprep.mubr.bf16.mxu0 0
        %1139 = vmatmul.mubr.bf16.gmra.mxu0 %v511
        %v1140 = vpop.f32.mrf.mxu0
        %v1141 = vadd.f32 %v868, %v1140
        %v1142 = vpop.f32.mrf.mxu0
        %v1143 = vadd.f32 %v870, %v1142
        %v1144 = vpop.f32.mrf.mxu0
        %v1145 = vadd.f32 %v872, %v1144
        %v1146 = vpop.f32.mrf.mxu0
        %v1147 = vadd.f32 %v874, %v1146
        %1148 = vmatprep.mubr.bf16.mxu0 0
        %1149 = vmatmul.mubr.bf16.gmra.mxu0 %v512
        %v1150 = vpop.f32.mrf.mxu0
        %v1151 = vadd.f32 %v878, %v1150
        %v1152 = vpop.f32.mrf.mxu0
        %v1153 = vadd.f32 %v880, %v1152
        %v1154 = vpop.f32.mrf.mxu0
        %v1155 = vadd.f32 %v882, %v1154
        %v1156 = vpop.f32.mrf.mxu0
        %v1157 = vadd.f32 %v884, %v1156
        %1158 = vmatprep.mubr.bf16.mxu0 0
        %1159 = vmatmul.mubr.bf16.gmra.mxu0 %v513
        %v1160 = vpop.f32.mrf.mxu0
        %v1161 = vadd.f32 %v888, %v1160
        %v1162 = vpop.f32.mrf.mxu0
        %v1163 = vadd.f32 %v890, %v1162
        %v1164 = vpop.f32.mrf.mxu0
        %v1165 = vadd.f32 %v892, %v1164
        %v1166 = vpop.f32.mrf.mxu0
        %v1167 = vadd.f32 %v894, %v1166
        %1168 = vmatprep.mubr.bf16.mxu0 0
        %1169 = vmatmul.mubr.bf16.gmra.mxu0 %v514
        %v1170 = vpop.f32.mrf.mxu0
        %v1171 = vadd.f32 %v898, %v1170
        %v1172 = vpop.f32.mrf.mxu0
        %v1173 = vadd.f32 %v900, %v1172
        %v1174 = vpop.f32.mrf.mxu0
        %v1175 = vadd.f32 %v902, %v1174
        %v1176 = vpop.f32.mrf.mxu0
        %v1177 = vadd.f32 %v904, %v1176
        %1178 = vmatprep.mubr.bf16.mxu0 0
        %1179 = vmatmul.mubr.bf16.gmra.mxu0 %v515
        %v1180 = vpop.f32.mrf.mxu0
        %v1181 = vadd.f32 %v908, %v1180
        %v1182 = vpop.f32.mrf.mxu0
        %v1183 = vadd.f32 %v910, %v1182
        %v1184 = vpop.f32.mrf.mxu0
        %v1185 = vadd.f32 %v912, %v1184
        %v1186 = vpop.f32.mrf.mxu0
        %v1187 = vadd.f32 %v914, %v1186
        %1188 = vmatprep.mubr.bf16.mxu0 0
        %1189 = vmatmul.mubr.bf16.gmra.mxu0 %v516
        %v1190 = vpop.f32.mrf.mxu0
        %v1191 = vadd.f32 %v918, %v1190
        %v1192 = vpop.f32.mrf.mxu0
        %v1193 = vadd.f32 %v920, %v1192
        %v1194 = vpop.f32.mrf.mxu0
        %v1195 = vadd.f32 %v922, %v1194
        %v1196 = vpop.f32.mrf.mxu0
        %v1197 = vadd.f32 %v924, %v1196
        %1198 = vmatprep.mubr.bf16.mxu0 0
        %1199 = vmatmul.mubr.bf16.gmra.mxu0 %v517
        %v1200 = vpop.f32.mrf.mxu0
        %v1201 = vadd.f32 %v928, %v1200
        %v1202 = vpop.f32.mrf.mxu0
        %v1203 = vadd.f32 %v930, %v1202
        %v1204 = vpop.f32.mrf.mxu0
        %v1205 = vadd.f32 %v932, %v1204
        %v1206 = vpop.f32.mrf.mxu0
        %v1207 = vadd.f32 %v934, %v1206
        %1208 = vdwg.mxu0
        %v1209 = vld [vmem:[%s5] sm:$0x3]
        %v1211 = vlaneseq
        %v1212 = vshrl.u32 %v1211, 7
        %v1213 = vsub.s32 0, %v1212
        %v1214 = vrot.slane %v1209, %v1213
        %v1215 = vlaneseq
        %v1216 = vshrl.u32 %v1215, 7
        %v1217 = vsub.s32 1, %v1216
        %v1218 = vrot.slane %v1209, %v1217
        %v1221 = vadd.f32 %v1051, %v1214
        %v1222 = vadd.f32 %v1053, %v1218
        %v1223 = vadd.f32 %v1055, %v1214
        %v1224 = vadd.f32 %v1057, %v1218
        %v1225 = vadd.f32 %v1061, %v1214
        %v1226 = vadd.f32 %v1063, %v1218
        %v1227 = vadd.f32 %v1065, %v1214
        %v1228 = vadd.f32 %v1067, %v1218
        %v1229 = vadd.f32 %v1071, %v1214
        %v1230 = vadd.f32 %v1073, %v1218
        %v1231 = vadd.f32 %v1075, %v1214
        %v1232 = vadd.f32 %v1077, %v1218
        %v1233 = vadd.f32 %v1081, %v1214
        %v1234 = vadd.f32 %v1083, %v1218
        %v1235 = vadd.f32 %v1085, %v1214
        %v1236 = vadd.f32 %v1087, %v1218
        %v1237 = vadd.f32 %v1091, %v1214
        %v1238 = vadd.f32 %v1093, %v1218
        %v1239 = vadd.f32 %v1095, %v1214
        %v1240 = vadd.f32 %v1097, %v1218
        %v1241 = vadd.f32 %v1101, %v1214
        %v1242 = vadd.f32 %v1103, %v1218
        %v1243 = vadd.f32 %v1105, %v1214
        %v1244 = vadd.f32 %v1107, %v1218
        %v1245 = vadd.f32 %v1111, %v1214
        %v1246 = vadd.f32 %v1113, %v1218
        %v1247 = vadd.f32 %v1115, %v1214
        %v1248 = vadd.f32 %v1117, %v1218
        %v1249 = vadd.f32 %v1121, %v1214
        %v1250 = vadd.f32 %v1123, %v1218
        %v1251 = vadd.f32 %v1125, %v1214
        %v1252 = vadd.f32 %v1127, %v1218
        %v1253 = vadd.f32 %v1131, %v1214
        %v1254 = vadd.f32 %v1133, %v1218
        %v1255 = vadd.f32 %v1135, %v1214
        %v1256 = vadd.f32 %v1137, %v1218
        %v1257 = vadd.f32 %v1141, %v1214
        %v1258 = vadd.f32 %v1143, %v1218
        %v1259 = vadd.f32 %v1145, %v1214
        %v1260 = vadd.f32 %v1147, %v1218
        %v1261 = vadd.f32 %v1151, %v1214
        %v1262 = vadd.f32 %v1153, %v1218
        %v1263 = vadd.f32 %v1155, %v1214
        %v1264 = vadd.f32 %v1157, %v1218
        %v1265 = vadd.f32 %v1161, %v1214
        %v1266 = vadd.f32 %v1163, %v1218
        %v1267 = vadd.f32 %v1165, %v1214
        %v1268 = vadd.f32 %v1167, %v1218
        %v1269 = vadd.f32 %v1171, %v1214
        %v1270 = vadd.f32 %v1173, %v1218
        %v1271 = vadd.f32 %v1175, %v1214
        %v1272 = vadd.f32 %v1177, %v1218
        %v1273 = vadd.f32 %v1181, %v1214
        %v1274 = vadd.f32 %v1183, %v1218
        %v1275 = vadd.f32 %v1185, %v1214
        %v1276 = vadd.f32 %v1187, %v1218
        %v1277 = vadd.f32 %v1191, %v1214
        %v1278 = vadd.f32 %v1193, %v1218
        %v1279 = vadd.f32 %v1195, %v1214
        %v1280 = vadd.f32 %v1197, %v1218
        %v1281 = vadd.f32 %v1201, %v1214
        %v1282 = vadd.f32 %v1203, %v1218
        %v1283 = vadd.f32 %v1205, %v1214
        %v1284 = vadd.f32 %v1207, %v1218
        %v1285 = vsub.f32 0.0, %v1221
        %v1286 = vsub.f32 0.0, %v1223
        %v1287 = vsub.f32 0.0, %v1225
        %v1288 = vsub.f32 0.0, %v1227
        %v1289 = vsub.f32 0.0, %v1229
        %v1290 = vsub.f32 0.0, %v1231
        %v1291 = vsub.f32 0.0, %v1233
        %v1292 = vsub.f32 0.0, %v1235
        %v1293 = vsub.f32 0.0, %v1237
        %v1294 = vsub.f32 0.0, %v1239
        %v1295 = vsub.f32 0.0, %v1241
        %v1296 = vsub.f32 0.0, %v1243
        %v1297 = vsub.f32 0.0, %v1245
        %v1298 = vsub.f32 0.0, %v1247
        %v1299 = vsub.f32 0.0, %v1249
        %v1300 = vsub.f32 0.0, %v1251
        %v1301 = vsub.f32 0.0, %v1253
        %v1302 = vsub.f32 0.0, %v1255
        %v1303 = vsub.f32 0.0, %v1257
        %v1304 = vsub.f32 0.0, %v1259
        %v1305 = vsub.f32 0.0, %v1261
        %v1306 = vsub.f32 0.0, %v1263
        %v1307 = vsub.f32 0.0, %v1265
        %v1308 = vsub.f32 0.0, %v1267
        %v1309 = vsub.f32 0.0, %v1269
        %v1310 = vsub.f32 0.0, %v1271
        %v1311 = vsub.f32 0.0, %v1273
        %v1312 = vsub.f32 0.0, %v1275
        %v1313 = vsub.f32 0.0, %v1277
        %v1314 = vsub.f32 0.0, %v1279
        %v1315 = vsub.f32 0.0, %v1281
        %v1316 = vsub.f32 0.0, %v1283
        %v1317 = vmul.f32 %v1285, 1.442695
        %v1318 = vpow.pop %v1317
        %v1319 = vmul.f32 %v1286, 1.442695
        %v1320 = vpow.pop %v1319
        %v1321 = vmul.f32 %v1287, 1.442695
        %v1322 = vpow.pop %v1321
        %v1323 = vmul.f32 %v1288, 1.442695
        %v1324 = vpow.pop %v1323
        %v1325 = vmul.f32 %v1289, 1.442695
        %v1326 = vpow.pop %v1325
        %v1327 = vmul.f32 %v1290, 1.442695
        %v1328 = vpow.pop %v1327
        %v1329 = vmul.f32 %v1291, 1.442695
        %v1330 = vpow.pop %v1329
        %v1331 = vmul.f32 %v1292, 1.442695
        %v1332 = vpow.pop %v1331
        %v1333 = vmul.f32 %v1293, 1.442695
        %v1334 = vpow.pop %v1333
        %v1335 = vmul.f32 %v1294, 1.442695
        %v1336 = vpow.pop %v1335
        %v1337 = vmul.f32 %v1295, 1.442695
        %v1338 = vpow.pop %v1337
        %v1339 = vmul.f32 %v1296, 1.442695
        %v1340 = vpow.pop %v1339
        %v1341 = vmul.f32 %v1297, 1.442695
        %v1342 = vpow.pop %v1341
        %v1343 = vmul.f32 %v1298, 1.442695
        %v1344 = vpow.pop %v1343
        %v1345 = vmul.f32 %v1299, 1.442695
        %v1346 = vpow.pop %v1345
        %v1347 = vmul.f32 %v1300, 1.442695
        %v1348 = vpow.pop %v1347
        %v1349 = vmul.f32 %v1301, 1.442695
        %v1350 = vpow.pop %v1349
        %v1351 = vmul.f32 %v1302, 1.442695
        %v1352 = vpow.pop %v1351
        %v1353 = vmul.f32 %v1303, 1.442695
        %v1354 = vpow.pop %v1353
        %v1355 = vmul.f32 %v1304, 1.442695
        %v1356 = vpow.pop %v1355
        %v1357 = vmul.f32 %v1305, 1.442695
        %v1358 = vpow.pop %v1357
        %v1359 = vmul.f32 %v1306, 1.442695
        %v1360 = vpow.pop %v1359
        %v1361 = vmul.f32 %v1307, 1.442695
        %v1362 = vpow.pop %v1361
        %v1363 = vmul.f32 %v1308, 1.442695
        %v1364 = vpow.pop %v1363
        %v1365 = vmul.f32 %v1309, 1.442695
        %v1366 = vpow.pop %v1365
        %v1367 = vmul.f32 %v1310, 1.442695
        %v1368 = vpow.pop %v1367
        %v1369 = vmul.f32 %v1311, 1.442695
        %v1370 = vpow.pop %v1369
        %v1371 = vmul.f32 %v1312, 1.442695
        %v1372 = vpow.pop %v1371
        %v1373 = vmul.f32 %v1313, 1.442695
        %v1374 = vpow.pop %v1373
        %v1375 = vmul.f32 %v1314, 1.442695
        %v1376 = vpow.pop %v1375
        %v1377 = vmul.f32 %v1315, 1.442695
        %v1378 = vpow.pop %v1377
        %v1379 = vmul.f32 %v1316, 1.442695
        %v1380 = vpow.pop %v1379
        %v1381 = vadd.f32 %v1318, 1.0
        %v1382 = vadd.f32 %v1320, 1.0
        %v1383 = vadd.f32 %v1322, 1.0
        %v1384 = vadd.f32 %v1324, 1.0
        %v1385 = vadd.f32 %v1326, 1.0
        %v1386 = vadd.f32 %v1328, 1.0
        %v1387 = vadd.f32 %v1330, 1.0
        %v1388 = vadd.f32 %v1332, 1.0
        %v1389 = vadd.f32 %v1334, 1.0
        %v1390 = vadd.f32 %v1336, 1.0
        %v1391 = vadd.f32 %v1338, 1.0
        %v1392 = vadd.f32 %v1340, 1.0
        %v1393 = vadd.f32 %v1342, 1.0
        %v1394 = vadd.f32 %v1344, 1.0
        %v1395 = vadd.f32 %v1346, 1.0
        %v1396 = vadd.f32 %v1348, 1.0
        %v1397 = vadd.f32 %v1350, 1.0
        %v1398 = vadd.f32 %v1352, 1.0
        %v1399 = vadd.f32 %v1354, 1.0
        %v1400 = vadd.f32 %v1356, 1.0
        %v1401 = vadd.f32 %v1358, 1.0
        %v1402 = vadd.f32 %v1360, 1.0
        %v1403 = vadd.f32 %v1362, 1.0
        %v1404 = vadd.f32 %v1364, 1.0
        %v1405 = vadd.f32 %v1366, 1.0
        %v1406 = vadd.f32 %v1368, 1.0
        %v1407 = vadd.f32 %v1370, 1.0
        %v1408 = vadd.f32 %v1372, 1.0
        %v1409 = vadd.f32 %v1374, 1.0
        %v1410 = vadd.f32 %v1376, 1.0
        %v1411 = vadd.f32 %v1378, 1.0
        %v1412 = vadd.f32 %v1380, 1.0
        %v1413 = vrcp.pop %v1381
        %v1414 = vrcp.pop %v1382
        %v1415 = vrcp.pop %v1383
        %v1416 = vrcp.pop %v1384
        %v1417 = vrcp.pop %v1385
        %v1418 = vrcp.pop %v1386
        %v1419 = vrcp.pop %v1387
        %v1420 = vrcp.pop %v1388
        %v1421 = vrcp.pop %v1389
        %v1422 = vrcp.pop %v1390
        %v1423 = vrcp.pop %v1391
        %v1424 = vrcp.pop %v1392
        %v1425 = vrcp.pop %v1393
        %v1426 = vrcp.pop %v1394
        %v1427 = vrcp.pop %v1395
        %v1428 = vrcp.pop %v1396
        %v1429 = vrcp.pop %v1397
        %v1430 = vrcp.pop %v1398
        %v1431 = vrcp.pop %v1399
        %v1432 = vrcp.pop %v1400
        %v1433 = vrcp.pop %v1401
        %v1434 = vrcp.pop %v1402
        %v1435 = vrcp.pop %v1403
        %v1436 = vrcp.pop %v1404
        %v1437 = vrcp.pop %v1405
        %v1438 = vrcp.pop %v1406
        %v1439 = vrcp.pop %v1407
        %v1440 = vrcp.pop %v1408
        %v1441 = vrcp.pop %v1409
        %v1442 = vrcp.pop %v1410
        %v1443 = vrcp.pop %v1411
        %v1444 = vrcp.pop %v1412
        %v1445 = vmul.f32 %v1221, %v1413
        %v1446 = vmul.f32 %v1223, %v1414
        %v1447 = vmul.f32 %v1225, %v1415
        %v1448 = vmul.f32 %v1227, %v1416
        %v1449 = vmul.f32 %v1229, %v1417
        %v1450 = vmul.f32 %v1231, %v1418
        %v1451 = vmul.f32 %v1233, %v1419
        %v1452 = vmul.f32 %v1235, %v1420
        %v1453 = vmul.f32 %v1237, %v1421
        %v1454 = vmul.f32 %v1239, %v1422
        %v1455 = vmul.f32 %v1241, %v1423
        %v1456 = vmul.f32 %v1243, %v1424
        %v1457 = vmul.f32 %v1245, %v1425
        %v1458 = vmul.f32 %v1247, %v1426
        %v1459 = vmul.f32 %v1249, %v1427
        %v1460 = vmul.f32 %v1251, %v1428
        %v1461 = vmul.f32 %v1253, %v1429
        %v1462 = vmul.f32 %v1255, %v1430
        %v1463 = vmul.f32 %v1257, %v1431
        %v1464 = vmul.f32 %v1259, %v1432
        %v1465 = vmul.f32 %v1261, %v1433
        %v1466 = vmul.f32 %v1263, %v1434
        %v1467 = vmul.f32 %v1265, %v1435
        %v1468 = vmul.f32 %v1267, %v1436
        %v1469 = vmul.f32 %v1269, %v1437
        %v1470 = vmul.f32 %v1271, %v1438
        %v1471 = vmul.f32 %v1273, %v1439
        %v1472 = vmul.f32 %v1275, %v1440
        %v1473 = vmul.f32 %v1277, %v1441
        %v1474 = vmul.f32 %v1279, %v1442
        %v1475 = vmul.f32 %v1281, %v1443
        %v1476 = vmul.f32 %v1283, %v1444
        %v1477 = vsub.f32 0.0, %v1222
        %v1478 = vsub.f32 0.0, %v1224
        %v1479 = vsub.f32 0.0, %v1226
        %v1480 = vsub.f32 0.0, %v1228
        %v1481 = vsub.f32 0.0, %v1230
        %v1482 = vsub.f32 0.0, %v1232
        %v1483 = vsub.f32 0.0, %v1234
        %v1484 = vsub.f32 0.0, %v1236
        %v1485 = vsub.f32 0.0, %v1238
        %v1486 = vsub.f32 0.0, %v1240
        %v1487 = vsub.f32 0.0, %v1242
        %v1488 = vsub.f32 0.0, %v1244
        %v1489 = vsub.f32 0.0, %v1246
        %v1490 = vsub.f32 0.0, %v1248
        %v1491 = vsub.f32 0.0, %v1250
        %v1492 = vsub.f32 0.0, %v1252
        %v1493 = vsub.f32 0.0, %v1254
        %v1494 = vsub.f32 0.0, %v1256
        %v1495 = vsub.f32 0.0, %v1258
        %v1496 = vsub.f32 0.0, %v1260
        %v1497 = vsub.f32 0.0, %v1262
        %v1498 = vsub.f32 0.0, %v1264
        %v1499 = vsub.f32 0.0, %v1266
        %v1500 = vsub.f32 0.0, %v1268
        %v1501 = vsub.f32 0.0, %v1270
        %v1502 = vsub.f32 0.0, %v1272
        %v1503 = vsub.f32 0.0, %v1274
        %v1504 = vsub.f32 0.0, %v1276
        %v1505 = vsub.f32 0.0, %v1278
        %v1506 = vsub.f32 0.0, %v1280
        %v1507 = vsub.f32 0.0, %v1282
        %v1508 = vsub.f32 0.0, %v1284
        %v1509 = vmul.f32 %v1477, 1.442695
        %v1510 = vpow.pop %v1509
        %v1511 = vmul.f32 %v1478, 1.442695
        %v1512 = vpow.pop %v1511
        %v1513 = vmul.f32 %v1479, 1.442695
        %v1514 = vpow.pop %v1513
        %v1515 = vmul.f32 %v1480, 1.442695
        %v1516 = vpow.pop %v1515
        %v1517 = vmul.f32 %v1481, 1.442695
        %v1518 = vpow.pop %v1517
        %v1519 = vmul.f32 %v1482, 1.442695
        %v1520 = vpow.pop %v1519
        %v1521 = vmul.f32 %v1483, 1.442695
        %v1522 = vpow.pop %v1521
        %v1523 = vmul.f32 %v1484, 1.442695
        %v1524 = vpow.pop %v1523
        %v1525 = vmul.f32 %v1485, 1.442695
        %v1526 = vpow.pop %v1525
        %v1527 = vmul.f32 %v1486, 1.442695
        %v1528 = vpow.pop %v1527
        %v1529 = vmul.f32 %v1487, 1.442695
        %v1530 = vpow.pop %v1529
        %v1531 = vmul.f32 %v1488, 1.442695
        %v1532 = vpow.pop %v1531
        %v1533 = vmul.f32 %v1489, 1.442695
        %v1534 = vpow.pop %v1533
        %v1535 = vmul.f32 %v1490, 1.442695
        %v1536 = vpow.pop %v1535
        %v1537 = vmul.f32 %v1491, 1.442695
        %v1538 = vpow.pop %v1537
        %v1539 = vmul.f32 %v1492, 1.442695
        %v1540 = vpow.pop %v1539
        %v1541 = vmul.f32 %v1493, 1.442695
        %v1542 = vpow.pop %v1541
        %v1543 = vmul.f32 %v1494, 1.442695
        %v1544 = vpow.pop %v1543
        %v1545 = vmul.f32 %v1495, 1.442695
        %v1546 = vpow.pop %v1545
        %v1547 = vmul.f32 %v1496, 1.442695
        %v1548 = vpow.pop %v1547
        %v1549 = vmul.f32 %v1497, 1.442695
        %v1550 = vpow.pop %v1549
        %v1551 = vmul.f32 %v1498, 1.442695
        %v1552 = vpow.pop %v1551
        %v1553 = vmul.f32 %v1499, 1.442695
        %v1554 = vpow.pop %v1553
        %v1555 = vmul.f32 %v1500, 1.442695
        %v1556 = vpow.pop %v1555
        %v1557 = vmul.f32 %v1501, 1.442695
        %v1558 = vpow.pop %v1557
        %v1559 = vmul.f32 %v1502, 1.442695
        %v1560 = vpow.pop %v1559
        %v1561 = vmul.f32 %v1503, 1.442695
        %v1562 = vpow.pop %v1561
        %v1563 = vmul.f32 %v1504, 1.442695
        %v1564 = vpow.pop %v1563
        %v1565 = vmul.f32 %v1505, 1.442695
        %v1566 = vpow.pop %v1565
        %v1567 = vmul.f32 %v1506, 1.442695
        %v1568 = vpow.pop %v1567
        %v1569 = vmul.f32 %v1507, 1.442695
        %v1570 = vpow.pop %v1569
        %v1571 = vmul.f32 %v1508, 1.442695
        %v1572 = vpow.pop %v1571
        %v1573 = vadd.f32 %v1510, 1.0
        %v1574 = vadd.f32 %v1512, 1.0
        %v1575 = vadd.f32 %v1514, 1.0
        %v1576 = vadd.f32 %v1516, 1.0
        %v1577 = vadd.f32 %v1518, 1.0
        %v1578 = vadd.f32 %v1520, 1.0
        %v1579 = vadd.f32 %v1522, 1.0
        %v1580 = vadd.f32 %v1524, 1.0
        %v1581 = vadd.f32 %v1526, 1.0
        %v1582 = vadd.f32 %v1528, 1.0
        %v1583 = vadd.f32 %v1530, 1.0
        %v1584 = vadd.f32 %v1532, 1.0
        %v1585 = vadd.f32 %v1534, 1.0
        %v1586 = vadd.f32 %v1536, 1.0
        %v1587 = vadd.f32 %v1538, 1.0
        %v1588 = vadd.f32 %v1540, 1.0
        %v1589 = vadd.f32 %v1542, 1.0
        %v1590 = vadd.f32 %v1544, 1.0
        %v1591 = vadd.f32 %v1546, 1.0
        %v1592 = vadd.f32 %v1548, 1.0
        %v1593 = vadd.f32 %v1550, 1.0
        %v1594 = vadd.f32 %v1552, 1.0
        %v1595 = vadd.f32 %v1554, 1.0
        %v1596 = vadd.f32 %v1556, 1.0
        %v1597 = vadd.f32 %v1558, 1.0
        %v1598 = vadd.f32 %v1560, 1.0
        %v1599 = vadd.f32 %v1562, 1.0
        %v1600 = vadd.f32 %v1564, 1.0
        %v1601 = vadd.f32 %v1566, 1.0
        %v1602 = vadd.f32 %v1568, 1.0
        %v1603 = vadd.f32 %v1570, 1.0
        %v1604 = vadd.f32 %v1572, 1.0
        %v1605 = vrcp.pop %v1573
        %v1606 = vrcp.pop %v1574
        %v1607 = vrcp.pop %v1575
        %v1608 = vrcp.pop %v1576
        %v1609 = vrcp.pop %v1577
        %v1610 = vrcp.pop %v1578
        %v1611 = vrcp.pop %v1579
        %v1612 = vrcp.pop %v1580
        %v1613 = vrcp.pop %v1581
        %v1614 = vrcp.pop %v1582
        %v1615 = vrcp.pop %v1583
        %v1616 = vrcp.pop %v1584
        %v1617 = vrcp.pop %v1585
        %v1618 = vrcp.pop %v1586
        %v1619 = vrcp.pop %v1587
        %v1620 = vrcp.pop %v1588
        %v1621 = vrcp.pop %v1589
        %v1622 = vrcp.pop %v1590
        %v1623 = vrcp.pop %v1591
        %v1624 = vrcp.pop %v1592
        %v1625 = vrcp.pop %v1593
        %v1626 = vrcp.pop %v1594
        %v1627 = vrcp.pop %v1595
        %v1628 = vrcp.pop %v1596
        %v1629 = vrcp.pop %v1597
        %v1630 = vrcp.pop %v1598
        %v1631 = vrcp.pop %v1599
        %v1632 = vrcp.pop %v1600
        %v1633 = vrcp.pop %v1601
        %v1634 = vrcp.pop %v1602
        %v1635 = vrcp.pop %v1603
        %v1636 = vrcp.pop %v1604
        %v1637 = vmul.f32 %v1445, %v1605
        %v1638 = vmul.f32 %v1446, %v1606
        %v1639 = vmul.f32 %v1447, %v1607
        %v1640 = vmul.f32 %v1448, %v1608
        %v1641 = vmul.f32 %v1449, %v1609
        %v1642 = vmul.f32 %v1450, %v1610
        %v1643 = vmul.f32 %v1451, %v1611
        %v1644 = vmul.f32 %v1452, %v1612
        %v1645 = vmul.f32 %v1453, %v1613
        %v1646 = vmul.f32 %v1454, %v1614
        %v1647 = vmul.f32 %v1455, %v1615
        %v1648 = vmul.f32 %v1456, %v1616
        %v1649 = vmul.f32 %v1457, %v1617
        %v1650 = vmul.f32 %v1458, %v1618
        %v1651 = vmul.f32 %v1459, %v1619
        %v1652 = vmul.f32 %v1460, %v1620
        %v1653 = vmul.f32 %v1461, %v1621
        %v1654 = vmul.f32 %v1462, %v1622
        %v1655 = vmul.f32 %v1463, %v1623
        %v1656 = vmul.f32 %v1464, %v1624
        %v1657 = vmul.f32 %v1465, %v1625
        %v1658 = vmul.f32 %v1466, %v1626
        %v1659 = vmul.f32 %v1467, %v1627
        %v1660 = vmul.f32 %v1468, %v1628
        %v1661 = vmul.f32 %v1469, %v1629
        %v1662 = vmul.f32 %v1470, %v1630
        %v1663 = vmul.f32 %v1471, %v1631
        %v1664 = vmul.f32 %v1472, %v1632
        %v1665 = vmul.f32 %v1473, %v1633
        %v1666 = vmul.f32 %v1474, %v1634
        %v1667 = vmul.f32 %v1475, %v1635
        %v1668 = vmul.f32 %v1476, %v1636
        %v1669 = vpack.c.bf16 %v1638, %v1637
        %v1670 = vpack.c.bf16 %v1640, %v1639
        %v1671 = vpack.c.bf16 %v1642, %v1641
        %v1672 = vpack.c.bf16 %v1644, %v1643
        %v1673 = vpack.c.bf16 %v1646, %v1645
        %v1674 = vpack.c.bf16 %v1648, %v1647
        %v1675 = vpack.c.bf16 %v1650, %v1649
        %v1676 = vpack.c.bf16 %v1652, %v1651
        %v1677 = vpack.c.bf16 %v1654, %v1653
        %v1678 = vpack.c.bf16 %v1656, %v1655
        %v1679 = vpack.c.bf16 %v1658, %v1657
        %v1680 = vpack.c.bf16 %v1660, %v1659
        %v1681 = vpack.c.bf16 %v1662, %v1661
        %v1682 = vpack.c.bf16 %v1664, %v1663
        %v1683 = vpack.c.bf16 %v1666, %v1665
        %v1684 = vpack.c.bf16 %v1668, %v1667
        %v1685 = vld [vmem:[%s6] sm:$0xf]
        %v1686 = vld [vmem:[%s6 + $0x4] sm:$0xf]
        %v1687 = vld [vmem:[%s6 + $0x8] sm:$0xf]
        %v1688 = vld [vmem:[%s6 + $0xc] sm:$0xf]
        %v1689 = vld [vmem:[%s6 + $0x10] sm:$0xf]
        %v1690 = vld [vmem:[%s6 + $0x14] sm:$0xf]
        %v1691 = vld [vmem:[%s6 + $0x18] sm:$0xf]
        %v1692 = vld [vmem:[%s6 + $0x1c] sm:$0xf]
        %v1693 = vld [vmem:[%s6 + $0x20] sm:$0xf]
        %v1694 = vld [vmem:[%s6 + $0x24] sm:$0xf]
        %v1695 = vld [vmem:[%s6 + $0x28] sm:$0xf]
        %v1696 = vld [vmem:[%s6 + $0x2c] sm:$0xf]
        %v1697 = vld [vmem:[%s6 + $0x30] sm:$0xf]
        %v1698 = vld [vmem:[%s6 + $0x34] sm:$0xf]
        %v1699 = vld [vmem:[%s6 + $0x38] sm:$0xf]
        %v1700 = vld [vmem:[%s6 + $0x3c] sm:$0xf]
        %v1701 = vld [vmem:[%s7] sm:$0x1]
        %v1703 = vlaneseq
        %v1704 = vshrl.u32 %v1703, 7
        %v1705 = vsub.s32 0, %v1704
        %v1706 = vrot.slane %v1701, %v1705
        %v1724 = vunpack.c.l.b16 %v1685
        %v1725 = vunpack.c.l.b16 %v1686
        %v1726 = vunpack.c.l.b16 %v1687
        %v1727 = vunpack.c.l.b16 %v1688
        %v1728 = vunpack.c.l.b16 %v1689
        %v1729 = vunpack.c.l.b16 %v1690
        %v1730 = vunpack.c.l.b16 %v1691
        %v1731 = vunpack.c.l.b16 %v1692
        %v1732 = vunpack.c.l.b16 %v1693
        %v1733 = vunpack.c.l.b16 %v1694
        %v1734 = vunpack.c.l.b16 %v1695
        %v1735 = vunpack.c.l.b16 %v1696
        %v1736 = vunpack.c.l.b16 %v1697
        %v1737 = vunpack.c.l.b16 %v1698
        %v1738 = vunpack.c.l.b16 %v1699
        %v1739 = vunpack.c.l.b16 %v1700
        %v1740 = vpack.c.b16 %v1725, %v1724
        %v1741 = vpack.c.b16 %v1727, %v1726
        %v1742 = vpack.c.b16 %v1729, %v1728
        %v1743 = vpack.c.b16 %v1731, %v1730
        %v1744 = vpack.c.b16 %v1733, %v1732
        %v1745 = vpack.c.b16 %v1735, %v1734
        %v1746 = vpack.c.b16 %v1737, %v1736
        %v1747 = vpack.c.b16 %v1739, %v1738
        %1756 = vmatprep.subr.bf16.mxu0 0
        %1757 = vmatpush1.bf16.msra.mxu0 %v1747
        %1758 = vmatprep.subr.bf16.mxu0 0
        %1759 = vmatpush1.bf16.msra.mxu0 %v1746
        %1760 = vmatprep.subr.bf16.mxu0 0
        %1761 = vmatpush1.bf16.msra.mxu0 %v1745
        %1762 = vmatprep.subr.bf16.mxu0 0
        %1763 = vmatpush1.bf16.msra.mxu0 %v1744
        %1764 = vmatprep.subr.bf16.mxu0 0
        %1765 = vmatpush1.bf16.msra.mxu0 %v1743
        %1766 = vmatprep.subr.bf16.mxu0 0
        %1767 = vmatpush1.bf16.msra.mxu0 %v1742
        %1768 = vmatprep.subr.bf16.mxu0 0
        %1769 = vmatpush1.bf16.msra.mxu0 %v1741
        %1770 = vmatprep.subr.bf16.mxu0 0
        %1771 = vmatpush1.bf16.msra.mxu0 %v1740
        %1772 = vmatprep.subr.bf16.mxu0 0
        %1773 = vmatpush2.bf16.msra.mxu0 0
        %1774 = vmatprep.subr.bf16.mxu0 0
        %1775 = vmatpush2.bf16.msra.mxu0 0
        %1776 = vmatprep.subr.bf16.mxu0 0
        %1777 = vmatpush2.bf16.msra.mxu0 0
        %1778 = vmatprep.subr.bf16.mxu0 0
        %1779 = vmatpush2.bf16.msra.mxu0 0
        %1780 = vmatprep.subr.bf16.mxu0 0
        %1781 = vmatpush2.bf16.msra.mxu0 0
        %1782 = vmatprep.subr.bf16.mxu0 0
        %1783 = vmatpush2.bf16.msra.mxu0 0
        %1784 = vmatprep.subr.bf16.mxu0 0
        %1785 = vmatpush2.bf16.msra.mxu0 0
        %1786 = vmatprep.subr.bf16.mxu0 0
        %1787 = vmatpush2.bf16.msra.mxu0 0
        %1788 = vmatprep.mubr.bf16.mxu0 0
        %1789 = vmatmul.mubr.bf16.gmra.mxu0 %v1669
        %v1790 = vpop.f32.mrf.mxu0
        %v1791 = vadd.f32 %v1706, %v1790
        %v1792 = vpop.f32.mrf.mxu0
        %v1793 = vpop.f32.mrf.mxu0
        %v1794 = vadd.f32 %v1706, %v1793
        %v1795 = vpop.f32.mrf.mxu0
        %1796 = vmatprep.mubr.bf16.mxu0 0
        %1797 = vmatmul.mubr.bf16.gmra.mxu0 %v1670
        %v1798 = vpop.f32.mrf.mxu0
        %v1799 = vadd.f32 %v1706, %v1798
        %v1800 = vpop.f32.mrf.mxu0
        %v1801 = vpop.f32.mrf.mxu0
        %v1802 = vadd.f32 %v1706, %v1801
        %v1803 = vpop.f32.mrf.mxu0
        %1804 = vmatprep.mubr.bf16.mxu0 0
        %1805 = vmatmul.mubr.bf16.gmra.mxu0 %v1671
        %v1806 = vpop.f32.mrf.mxu0
        %v1807 = vadd.f32 %v1706, %v1806
        %v1808 = vpop.f32.mrf.mxu0
        %v1809 = vpop.f32.mrf.mxu0
        %v1810 = vadd.f32 %v1706, %v1809
        %v1811 = vpop.f32.mrf.mxu0
        %1812 = vmatprep.mubr.bf16.mxu0 0
        %1813 = vmatmul.mubr.bf16.gmra.mxu0 %v1672
        %v1814 = vpop.f32.mrf.mxu0
        %v1815 = vadd.f32 %v1706, %v1814
        %v1816 = vpop.f32.mrf.mxu0
        %v1817 = vpop.f32.mrf.mxu0
        %v1818 = vadd.f32 %v1706, %v1817
        %v1819 = vpop.f32.mrf.mxu0
        %1820 = vmatprep.mubr.bf16.mxu0 0
        %1821 = vmatmul.mubr.bf16.gmra.mxu0 %v1673
        %v1822 = vpop.f32.mrf.mxu0
        %v1823 = vadd.f32 %v1706, %v1822
        %v1824 = vpop.f32.mrf.mxu0
        %v1825 = vpop.f32.mrf.mxu0
        %v1826 = vadd.f32 %v1706, %v1825
        %v1827 = vpop.f32.mrf.mxu0
        %1828 = vmatprep.mubr.bf16.mxu0 0
        %1829 = vmatmul.mubr.bf16.gmra.mxu0 %v1674
        %v1830 = vpop.f32.mrf.mxu0
        %v1831 = vadd.f32 %v1706, %v1830
        %v1832 = vpop.f32.mrf.mxu0
        %v1833 = vpop.f32.mrf.mxu0
        %v1834 = vadd.f32 %v1706, %v1833
        %v1835 = vpop.f32.mrf.mxu0
        %1836 = vmatprep.mubr.bf16.mxu0 0
        %1837 = vmatmul.mubr.bf16.gmra.mxu0 %v1675
        %v1838 = vpop.f32.mrf.mxu0
        %v1839 = vadd.f32 %v1706, %v1838
        %v1840 = vpop.f32.mrf.mxu0
        %v1841 = vpop.f32.mrf.mxu0
        %v1842 = vadd.f32 %v1706, %v1841
        %v1843 = vpop.f32.mrf.mxu0
        %1844 = vmatprep.mubr.bf16.mxu0 0
        %1845 = vmatmul.mubr.bf16.gmra.mxu0 %v1676
        %v1846 = vpop.f32.mrf.mxu0
        %v1847 = vadd.f32 %v1706, %v1846
        %v1848 = vpop.f32.mrf.mxu0
        %v1849 = vpop.f32.mrf.mxu0
        %v1850 = vadd.f32 %v1706, %v1849
        %v1851 = vpop.f32.mrf.mxu0
        %1852 = vmatprep.mubr.bf16.mxu0 0
        %1853 = vmatmul.mubr.bf16.gmra.mxu0 %v1677
        %v1854 = vpop.f32.mrf.mxu0
        %v1855 = vadd.f32 %v1706, %v1854
        %v1856 = vpop.f32.mrf.mxu0
        %v1857 = vpop.f32.mrf.mxu0
        %v1858 = vadd.f32 %v1706, %v1857
        %v1859 = vpop.f32.mrf.mxu0
        %1860 = vmatprep.mubr.bf16.mxu0 0
        %1861 = vmatmul.mubr.bf16.gmra.mxu0 %v1678
        %v1862 = vpop.f32.mrf.mxu0
        %v1863 = vadd.f32 %v1706, %v1862
        %v1864 = vpop.f32.mrf.mxu0
        %v1865 = vpop.f32.mrf.mxu0
        %v1866 = vadd.f32 %v1706, %v1865
        %v1867 = vpop.f32.mrf.mxu0
        %1868 = vmatprep.mubr.bf16.mxu0 0
        %1869 = vmatmul.mubr.bf16.gmra.mxu0 %v1679
        %v1870 = vpop.f32.mrf.mxu0
        %v1871 = vadd.f32 %v1706, %v1870
        %v1872 = vpop.f32.mrf.mxu0
        %v1873 = vpop.f32.mrf.mxu0
        %v1874 = vadd.f32 %v1706, %v1873
        %v1875 = vpop.f32.mrf.mxu0
        %1876 = vmatprep.mubr.bf16.mxu0 0
        %1877 = vmatmul.mubr.bf16.gmra.mxu0 %v1680
        %v1878 = vpop.f32.mrf.mxu0
        %v1879 = vadd.f32 %v1706, %v1878
        %v1880 = vpop.f32.mrf.mxu0
        %v1881 = vpop.f32.mrf.mxu0
        %v1882 = vadd.f32 %v1706, %v1881
        %v1883 = vpop.f32.mrf.mxu0
        %1884 = vmatprep.mubr.bf16.mxu0 0
        %1885 = vmatmul.mubr.bf16.gmra.mxu0 %v1681
        %v1886 = vpop.f32.mrf.mxu0
        %v1887 = vadd.f32 %v1706, %v1886
        %v1888 = vpop.f32.mrf.mxu0
        %v1889 = vpop.f32.mrf.mxu0
        %v1890 = vadd.f32 %v1706, %v1889
        %v1891 = vpop.f32.mrf.mxu0
        %1892 = vmatprep.mubr.bf16.mxu0 0
        %1893 = vmatmul.mubr.bf16.gmra.mxu0 %v1682
        %v1894 = vpop.f32.mrf.mxu0
        %v1895 = vadd.f32 %v1706, %v1894
        %v1896 = vpop.f32.mrf.mxu0
        %v1897 = vpop.f32.mrf.mxu0
        %v1898 = vadd.f32 %v1706, %v1897
        %v1899 = vpop.f32.mrf.mxu0
        %1900 = vmatprep.mubr.bf16.mxu0 0
        %1901 = vmatmul.mubr.bf16.gmra.mxu0 %v1683
        %v1902 = vpop.f32.mrf.mxu0
        %v1903 = vadd.f32 %v1706, %v1902
        %v1904 = vpop.f32.mrf.mxu0
        %v1905 = vpop.f32.mrf.mxu0
        %v1906 = vadd.f32 %v1706, %v1905
        %v1907 = vpop.f32.mrf.mxu0
        %1908 = vmatprep.mubr.bf16.mxu0 0
        %1909 = vmatmul.mubr.bf16.gmra.mxu0 %v1684
        %v1910 = vpop.f32.mrf.mxu0
        %v1911 = vadd.f32 %v1706, %v1910
        %v1912 = vpop.f32.mrf.mxu0
        %v1913 = vpop.f32.mrf.mxu0
        %v1914 = vadd.f32 %v1706, %v1913
        %v1915 = vpop.f32.mrf.mxu0
        %1916 = vdwg.mxu0
        %v1917 = vld [vmem:[%s458] sm:$0xff]
        %v1918 = vld [vmem:[%s458 + $0x8] sm:$0xff]
        %v1919 = vld [vmem:[%s458 + $0x10] sm:$0xff]
        %v1920 = vld [vmem:[%s458 + $0x18] sm:$0xff]
        %v1921 = vld [vmem:[%s458 + $0x20] sm:$0xff]
        %v1922 = vld [vmem:[%s458 + $0x28] sm:$0xff]
        %v1923 = vld [vmem:[%s458 + $0x30] sm:$0xff]
        %v1924 = vld [vmem:[%s458 + $0x38] sm:$0xff]
        %v1925 = vld [vmem:[%s458 + $0x40] sm:$0xff]
        %v1926 = vld [vmem:[%s458 + $0x48] sm:$0xff]
        %v1927 = vld [vmem:[%s458 + $0x50] sm:$0xff]
        %v1928 = vld [vmem:[%s458 + $0x58] sm:$0xff]
        %v1929 = vld [vmem:[%s458 + $0x60] sm:$0xff]
        %v1930 = vld [vmem:[%s458 + $0x68] sm:$0xff]
        %v1931 = vld [vmem:[%s458 + $0x70] sm:$0xff]
        %v1932 = vld [vmem:[%s458 + $0x78] sm:$0xff]
        %v1933 = vld [vmem:[%s458 + $0x80] sm:$0xff]
        %v1934 = vld [vmem:[%s458 + $0x88] sm:$0xff]
        %v1935 = vld [vmem:[%s458 + $0x90] sm:$0xff]
        %v1936 = vld [vmem:[%s458 + $0x98] sm:$0xff]
        %v1937 = vld [vmem:[%s458 + $0xa0] sm:$0xff]
        %v1938 = vld [vmem:[%s458 + $0xa8] sm:$0xff]
        %v1939 = vld [vmem:[%s458 + $0xb0] sm:$0xff]
        %v1940 = vld [vmem:[%s458 + $0xb8] sm:$0xff]
        %v1941 = vld [vmem:[%s458 + $0xc0] sm:$0xff]
        %v1942 = vld [vmem:[%s458 + $0xc8] sm:$0xff]
        %v1943 = vld [vmem:[%s458 + $0xd0] sm:$0xff]
        %v1944 = vld [vmem:[%s458 + $0xd8] sm:$0xff]
        %v1945 = vld [vmem:[%s458 + $0xe0] sm:$0xff]
        %v1946 = vld [vmem:[%s458 + $0xe8] sm:$0xff]
        %v1947 = vld [vmem:[%s458 + $0xf0] sm:$0xff]
        %v1948 = vld [vmem:[%s458 + $0xf8] sm:$0xff]
        %v1949 = vpack.c.bf16 %v1918, %v1917
        %v1950 = vpack.c.bf16 %v1920, %v1919
        %v1951 = vpack.c.bf16 %v1922, %v1921
        %v1952 = vpack.c.bf16 %v1924, %v1923
        %v1953 = vpack.c.bf16 %v1926, %v1925
        %v1954 = vpack.c.bf16 %v1928, %v1927
        %v1955 = vpack.c.bf16 %v1930, %v1929
        %v1956 = vpack.c.bf16 %v1932, %v1931
        %v1957 = vpack.c.bf16 %v1934, %v1933
        %v1958 = vpack.c.bf16 %v1936, %v1935
        %v1959 = vpack.c.bf16 %v1938, %v1937
        %v1960 = vpack.c.bf16 %v1940, %v1939
        %v1961 = vpack.c.bf16 %v1942, %v1941
        %v1962 = vpack.c.bf16 %v1944, %v1943
        %v1963 = vpack.c.bf16 %v1946, %v1945
        %v1964 = vpack.c.bf16 %v1948, %v1947
        %v1965 = vld [vmem:[%s8] sm:$0xf]
        %v1966 = vld [vmem:[%s8 + $0x4] sm:$0xf]
        %v1967 = vld [vmem:[%s9] sm:$0x1]
        %v1969 = vlaneseq
        %v1970 = vshrl.u32 %v1969, 7
        %v1971 = vsub.s32 0, %v1970
        %v1972 = vrot.slane %v1967, %v1971
        %v1976 = vunpack.c.l.b16 %v1965
        %v1977 = vunpack.c.l.b16 %v1966
        %v1978 = vpack.c.b16 %v1977, %v1976
        %vm1980 = vcmask 130048
        %v1982 = vsel %vm1980, %v1949, 0
        %v1985 = vsel %vm1980, %v1950, 0
        %v1988 = vsel %vm1980, %v1951, 0
        %v1991 = vsel %vm1980, %v1952, 0
        %v1994 = vsel %vm1980, %v1953, 0
        %v1997 = vsel %vm1980, %v1954, 0
        %v2000 = vsel %vm1980, %v1955, 0
        %v2003 = vsel %vm1980, %v1956, 0
        %v2006 = vsel %vm1980, %v1957, 0
        %v2009 = vsel %vm1980, %v1958, 0
        %v2012 = vsel %vm1980, %v1959, 0
        %v2015 = vsel %vm1980, %v1960, 0
        %v2018 = vsel %vm1980, %v1961, 0
        %v2021 = vsel %vm1980, %v1962, 0
        %v2024 = vsel %vm1980, %v1963, 0
        %v2027 = vsel %vm1980, %v1964, 0
        %2029 = vmatprep.subr.bf16.mxu0 0
        %2030 = vmatpush1.bf16.msra.mxu0 0
        %2031 = vmatprep.subr.bf16.mxu0 0
        %2032 = vmatpush1.bf16.msra.mxu0 0
        %2033 = vmatprep.subr.bf16.mxu0 0
        %2034 = vmatpush1.bf16.msra.mxu0 0
        %2035 = vmatprep.subr.bf16.mxu0 0
        %2036 = vmatpush1.bf16.msra.mxu0 0
        %2037 = vmatprep.subr.bf16.mxu0 0
        %2038 = vmatpush1.bf16.msra.mxu0 0
        %2039 = vmatprep.subr.bf16.mxu0 0
        %2040 = vmatpush1.bf16.msra.mxu0 0
        %2041 = vmatprep.subr.bf16.mxu0 0
        %2042 = vmatpush1.bf16.msra.mxu0 0
        %2043 = vmatprep.subr.bf16.mxu0 0
        %2044 = vmatpush1.bf16.msra.mxu0 %v1978
        %2045 = vmatprep.subr.bf16.mxu0 0
        %2046 = vmatpush2.bf16.msra.mxu0 0
        %2047 = vmatprep.subr.bf16.mxu0 0
        %2048 = vmatpush2.bf16.msra.mxu0 0
        %2049 = vmatprep.subr.bf16.mxu0 0
        %2050 = vmatpush2.bf16.msra.mxu0 0
        %2051 = vmatprep.subr.bf16.mxu0 0
        %2052 = vmatpush2.bf16.msra.mxu0 0
        %2053 = vmatprep.subr.bf16.mxu0 0
        %2054 = vmatpush2.bf16.msra.mxu0 0
        %2055 = vmatprep.subr.bf16.mxu0 0
        %2056 = vmatpush2.bf16.msra.mxu0 0
        %2057 = vmatprep.subr.bf16.mxu0 0
        %2058 = vmatpush2.bf16.msra.mxu0 0
        %2059 = vmatprep.subr.bf16.mxu0 0
        %2060 = vmatpush2.bf16.msra.mxu0 0
        %2061 = vmatprep.mubr.bf16.mxu0 0
        %2062 = vmatmul.mubr.bf16.gmra.mxu0 %v1982
        %v2063 = vpop.f32.mrf.mxu0
        %v2064 = vadd.f32 %v1972, %v2063
        %v2065 = vpop.f32.mrf.mxu0
        %v2066 = vpop.f32.mrf.mxu0
        %v2067 = vadd.f32 %v1972, %v2066
        %v2068 = vpop.f32.mrf.mxu0
        %2069 = vmatprep.mubr.bf16.mxu0 0
        %2070 = vmatmul.mubr.bf16.gmra.mxu0 %v1985
        %v2071 = vpop.f32.mrf.mxu0
        %v2072 = vadd.f32 %v1972, %v2071
        %v2073 = vpop.f32.mrf.mxu0
        %v2074 = vpop.f32.mrf.mxu0
        %v2075 = vadd.f32 %v1972, %v2074
        %v2076 = vpop.f32.mrf.mxu0
        %2077 = vmatprep.mubr.bf16.mxu0 0
        %2078 = vmatmul.mubr.bf16.gmra.mxu0 %v1988
        %v2079 = vpop.f32.mrf.mxu0
        %v2080 = vadd.f32 %v1972, %v2079
        %v2081 = vpop.f32.mrf.mxu0
        %v2082 = vpop.f32.mrf.mxu0
        %v2083 = vadd.f32 %v1972, %v2082
        %v2084 = vpop.f32.mrf.mxu0
        %2085 = vmatprep.mubr.bf16.mxu0 0
        %2086 = vmatmul.mubr.bf16.gmra.mxu0 %v1991
        %v2087 = vpop.f32.mrf.mxu0
        %v2088 = vadd.f32 %v1972, %v2087
        %v2089 = vpop.f32.mrf.mxu0
        %v2090 = vpop.f32.mrf.mxu0
        %v2091 = vadd.f32 %v1972, %v2090
        %v2092 = vpop.f32.mrf.mxu0
        %2093 = vmatprep.mubr.bf16.mxu0 0
        %2094 = vmatmul.mubr.bf16.gmra.mxu0 %v1994
        %v2095 = vpop.f32.mrf.mxu0
        %v2096 = vadd.f32 %v1972, %v2095
        %v2097 = vpop.f32.mrf.mxu0
        %v2098 = vpop.f32.mrf.mxu0
        %v2099 = vadd.f32 %v1972, %v2098
        %v2100 = vpop.f32.mrf.mxu0
        %2101 = vmatprep.mubr.bf16.mxu0 0
        %2102 = vmatmul.mubr.bf16.gmra.mxu0 %v1997
        %v2103 = vpop.f32.mrf.mxu0
        %v2104 = vadd.f32 %v1972, %v2103
        %v2105 = vpop.f32.mrf.mxu0
        %v2106 = vpop.f32.mrf.mxu0
        %v2107 = vadd.f32 %v1972, %v2106
        %v2108 = vpop.f32.mrf.mxu0
        %2109 = vmatprep.mubr.bf16.mxu0 0
        %2110 = vmatmul.mubr.bf16.gmra.mxu0 %v2000
        %v2111 = vpop.f32.mrf.mxu0
        %v2112 = vadd.f32 %v1972, %v2111
        %v2113 = vpop.f32.mrf.mxu0
        %v2114 = vpop.f32.mrf.mxu0
        %v2115 = vadd.f32 %v1972, %v2114
        %v2116 = vpop.f32.mrf.mxu0
        %2117 = vmatprep.mubr.bf16.mxu0 0
        %2118 = vmatmul.mubr.bf16.gmra.mxu0 %v2003
        %v2119 = vpop.f32.mrf.mxu0
        %v2120 = vadd.f32 %v1972, %v2119
        %v2121 = vpop.f32.mrf.mxu0
        %v2122 = vpop.f32.mrf.mxu0
        %v2123 = vadd.f32 %v1972, %v2122
        %v2124 = vpop.f32.mrf.mxu0
        %2125 = vmatprep.mubr.bf16.mxu0 0
        %2126 = vmatmul.mubr.bf16.gmra.mxu0 %v2006
        %v2127 = vpop.f32.mrf.mxu0
        %v2128 = vadd.f32 %v1972, %v2127
        %v2129 = vpop.f32.mrf.mxu0
        %v2130 = vpop.f32.mrf.mxu0
        %v2131 = vadd.f32 %v1972, %v2130
        %v2132 = vpop.f32.mrf.mxu0
        %2133 = vmatprep.mubr.bf16.mxu0 0
        %2134 = vmatmul.mubr.bf16.gmra.mxu0 %v2009
        %v2135 = vpop.f32.mrf.mxu0
        %v2136 = vadd.f32 %v1972, %v2135
        %v2137 = vpop.f32.mrf.mxu0
        %v2138 = vpop.f32.mrf.mxu0
        %v2139 = vadd.f32 %v1972, %v2138
        %v2140 = vpop.f32.mrf.mxu0
        %2141 = vmatprep.mubr.bf16.mxu0 0
        %2142 = vmatmul.mubr.bf16.gmra.mxu0 %v2012
        %v2143 = vpop.f32.mrf.mxu0
        %v2144 = vadd.f32 %v1972, %v2143
        %v2145 = vpop.f32.mrf.mxu0
        %v2146 = vpop.f32.mrf.mxu0
        %v2147 = vadd.f32 %v1972, %v2146
        %v2148 = vpop.f32.mrf.mxu0
        %2149 = vmatprep.mubr.bf16.mxu0 0
        %2150 = vmatmul.mubr.bf16.gmra.mxu0 %v2015
        %v2151 = vpop.f32.mrf.mxu0
        %v2152 = vadd.f32 %v1972, %v2151
        %v2153 = vpop.f32.mrf.mxu0
        %v2154 = vpop.f32.mrf.mxu0
        %v2155 = vadd.f32 %v1972, %v2154
        %v2156 = vpop.f32.mrf.mxu0
        %2157 = vmatprep.mubr.bf16.mxu0 0
        %2158 = vmatmul.mubr.bf16.gmra.mxu0 %v2018
        %v2159 = vpop.f32.mrf.mxu0
        %v2160 = vadd.f32 %v1972, %v2159
        %v2161 = vpop.f32.mrf.mxu0
        %v2162 = vpop.f32.mrf.mxu0
        %v2163 = vadd.f32 %v1972, %v2162
        %v2164 = vpop.f32.mrf.mxu0
        %2165 = vmatprep.mubr.bf16.mxu0 0
        %2166 = vmatmul.mubr.bf16.gmra.mxu0 %v2021
        %v2167 = vpop.f32.mrf.mxu0
        %v2168 = vadd.f32 %v1972, %v2167
        %v2169 = vpop.f32.mrf.mxu0
        %v2170 = vpop.f32.mrf.mxu0
        %v2171 = vadd.f32 %v1972, %v2170
        %v2172 = vpop.f32.mrf.mxu0
        %2173 = vmatprep.mubr.bf16.mxu0 0
        %2174 = vmatmul.mubr.bf16.gmra.mxu0 %v2024
        %v2175 = vpop.f32.mrf.mxu0
        %v2176 = vadd.f32 %v1972, %v2175
        %v2177 = vpop.f32.mrf.mxu0
        %v2178 = vpop.f32.mrf.mxu0
        %v2179 = vadd.f32 %v1972, %v2178
        %v2180 = vpop.f32.mrf.mxu0
        %2181 = vmatprep.mubr.bf16.mxu0 0
        %2182 = vmatmul.mubr.bf16.gmra.mxu0 %v2027
        %v2183 = vpop.f32.mrf.mxu0
        %v2184 = vadd.f32 %v1972, %v2183
        %v2185 = vpop.f32.mrf.mxu0
        %v2186 = vpop.f32.mrf.mxu0
        %v2187 = vadd.f32 %v1972, %v2186
        %v2188 = vpop.f32.mrf.mxu0
        %2189 = vdwg.mxu0
        %v2190 = vsub.f32 0.0, %v1791
        %v2191 = vsub.f32 0.0, %v1794
        %v2192 = vsub.f32 0.0, %v1799
        %v2193 = vsub.f32 0.0, %v1802
        %v2194 = vsub.f32 0.0, %v1807
        %v2195 = vsub.f32 0.0, %v1810
        %v2196 = vsub.f32 0.0, %v1815
        %v2197 = vsub.f32 0.0, %v1818
        %v2198 = vsub.f32 0.0, %v1823
        %v2199 = vsub.f32 0.0, %v1826
        %v2200 = vsub.f32 0.0, %v1831
        %v2201 = vsub.f32 0.0, %v1834
        %v2202 = vsub.f32 0.0, %v1839
        %v2203 = vsub.f32 0.0, %v1842
        %v2204 = vsub.f32 0.0, %v1847
        %v2205 = vsub.f32 0.0, %v1850
        %v2206 = vsub.f32 0.0, %v1855
        %v2207 = vsub.f32 0.0, %v1858
        %v2208 = vsub.f32 0.0, %v1863
        %v2209 = vsub.f32 0.0, %v1866
        %v2210 = vsub.f32 0.0, %v1871
        %v2211 = vsub.f32 0.0, %v1874
        %v2212 = vsub.f32 0.0, %v1879
        %v2213 = vsub.f32 0.0, %v1882
        %v2214 = vsub.f32 0.0, %v1887
        %v2215 = vsub.f32 0.0, %v1890
        %v2216 = vsub.f32 0.0, %v1895
        %v2217 = vsub.f32 0.0, %v1898
        %v2218 = vsub.f32 0.0, %v1903
        %v2219 = vsub.f32 0.0, %v1906
        %v2220 = vsub.f32 0.0, %v1911
        %v2221 = vsub.f32 0.0, %v1914
        %v2222 = vmul.f32 %v2190, 1.442695
        %v2223 = vpow.pop %v2222
        %v2224 = vmul.f32 %v2191, 1.442695
        %v2225 = vpow.pop %v2224
        %v2226 = vmul.f32 %v2192, 1.442695
        %v2227 = vpow.pop %v2226
        %v2228 = vmul.f32 %v2193, 1.442695
        %v2229 = vpow.pop %v2228
        %v2230 = vmul.f32 %v2194, 1.442695
        %v2231 = vpow.pop %v2230
        %v2232 = vmul.f32 %v2195, 1.442695
        %v2233 = vpow.pop %v2232
        %v2234 = vmul.f32 %v2196, 1.442695
        %v2235 = vpow.pop %v2234
        %v2236 = vmul.f32 %v2197, 1.442695
        %v2237 = vpow.pop %v2236
        %v2238 = vmul.f32 %v2198, 1.442695
        %v2239 = vpow.pop %v2238
        %v2240 = vmul.f32 %v2199, 1.442695
        %v2241 = vpow.pop %v2240
        %v2242 = vmul.f32 %v2200, 1.442695
        %v2243 = vpow.pop %v2242
        %v2244 = vmul.f32 %v2201, 1.442695
        %v2245 = vpow.pop %v2244
        %v2246 = vmul.f32 %v2202, 1.442695
        %v2247 = vpow.pop %v2246
        %v2248 = vmul.f32 %v2203, 1.442695
        %v2249 = vpow.pop %v2248
        %v2250 = vmul.f32 %v2204, 1.442695
        %v2251 = vpow.pop %v2250
        %v2252 = vmul.f32 %v2205, 1.442695
        %v2253 = vpow.pop %v2252
        %v2254 = vmul.f32 %v2206, 1.442695
        %v2255 = vpow.pop %v2254
        %v2256 = vmul.f32 %v2207, 1.442695
        %v2257 = vpow.pop %v2256
        %v2258 = vmul.f32 %v2208, 1.442695
        %v2259 = vpow.pop %v2258
        %v2260 = vmul.f32 %v2209, 1.442695
        %v2261 = vpow.pop %v2260
        %v2262 = vmul.f32 %v2210, 1.442695
        %v2263 = vpow.pop %v2262
        %v2264 = vmul.f32 %v2211, 1.442695
        %v2265 = vpow.pop %v2264
        %v2266 = vmul.f32 %v2212, 1.442695
        %v2267 = vpow.pop %v2266
        %v2268 = vmul.f32 %v2213, 1.442695
        %v2269 = vpow.pop %v2268
        %v2270 = vmul.f32 %v2214, 1.442695
        %v2271 = vpow.pop %v2270
        %v2272 = vmul.f32 %v2215, 1.442695
        %v2273 = vpow.pop %v2272
        %v2274 = vmul.f32 %v2216, 1.442695
        %v2275 = vpow.pop %v2274
        %v2276 = vmul.f32 %v2217, 1.442695
        %v2277 = vpow.pop %v2276
        %v2278 = vmul.f32 %v2218, 1.442695
        %v2279 = vpow.pop %v2278
        %v2280 = vmul.f32 %v2219, 1.442695
        %v2281 = vpow.pop %v2280
        %v2282 = vmul.f32 %v2220, 1.442695
        %v2283 = vpow.pop %v2282
        %v2284 = vmul.f32 %v2221, 1.442695
        %v2285 = vpow.pop %v2284
        %v2286 = vadd.f32 %v2223, 1.0
        %v2287 = vadd.f32 %v2225, 1.0
        %v2288 = vadd.f32 %v2227, 1.0
        %v2289 = vadd.f32 %v2229, 1.0
        %v2290 = vadd.f32 %v2231, 1.0
        %v2291 = vadd.f32 %v2233, 1.0
        %v2292 = vadd.f32 %v2235, 1.0
        %v2293 = vadd.f32 %v2237, 1.0
        %v2294 = vadd.f32 %v2239, 1.0
        %v2295 = vadd.f32 %v2241, 1.0
        %v2296 = vadd.f32 %v2243, 1.0
        %v2297 = vadd.f32 %v2245, 1.0
        %v2298 = vadd.f32 %v2247, 1.0
        %v2299 = vadd.f32 %v2249, 1.0
        %v2300 = vadd.f32 %v2251, 1.0
        %v2301 = vadd.f32 %v2253, 1.0
        %v2302 = vadd.f32 %v2255, 1.0
        %v2303 = vadd.f32 %v2257, 1.0
        %v2304 = vadd.f32 %v2259, 1.0
        %v2305 = vadd.f32 %v2261, 1.0
        %v2306 = vadd.f32 %v2263, 1.0
        %v2307 = vadd.f32 %v2265, 1.0
        %v2308 = vadd.f32 %v2267, 1.0
        %v2309 = vadd.f32 %v2269, 1.0
        %v2310 = vadd.f32 %v2271, 1.0
        %v2311 = vadd.f32 %v2273, 1.0
        %v2312 = vadd.f32 %v2275, 1.0
        %v2313 = vadd.f32 %v2277, 1.0
        %v2314 = vadd.f32 %v2279, 1.0
        %v2315 = vadd.f32 %v2281, 1.0
        %v2316 = vadd.f32 %v2283, 1.0
        %v2317 = vadd.f32 %v2285, 1.0
        %v2318 = vrcp.pop %v2286
        %v2319 = vrcp.pop %v2287
        %v2320 = vrcp.pop %v2288
        %v2321 = vrcp.pop %v2289
        %v2322 = vrcp.pop %v2290
        %v2323 = vrcp.pop %v2291
        %v2324 = vrcp.pop %v2292
        %v2325 = vrcp.pop %v2293
        %v2326 = vrcp.pop %v2294
        %v2327 = vrcp.pop %v2295
        %v2328 = vrcp.pop %v2296
        %v2329 = vrcp.pop %v2297
        %v2330 = vrcp.pop %v2298
        %v2331 = vrcp.pop %v2299
        %v2332 = vrcp.pop %v2300
        %v2333 = vrcp.pop %v2301
        %v2334 = vrcp.pop %v2302
        %v2335 = vrcp.pop %v2303
        %v2336 = vrcp.pop %v2304
        %v2337 = vrcp.pop %v2305
        %v2338 = vrcp.pop %v2306
        %v2339 = vrcp.pop %v2307
        %v2340 = vrcp.pop %v2308
        %v2341 = vrcp.pop %v2309
        %v2342 = vrcp.pop %v2310
        %v2343 = vrcp.pop %v2311
        %v2344 = vrcp.pop %v2312
        %v2345 = vrcp.pop %v2313
        %v2346 = vrcp.pop %v2314
        %v2347 = vrcp.pop %v2315
        %v2348 = vrcp.pop %v2316
        %v2349 = vrcp.pop %v2317
        %v2350 = vmul.f32 %v1791, %v2318
        %v2351 = vmul.f32 %v1794, %v2319
        %v2352 = vmul.f32 %v1799, %v2320
        %v2353 = vmul.f32 %v1802, %v2321
        %v2354 = vmul.f32 %v1807, %v2322
        %v2355 = vmul.f32 %v1810, %v2323
        %v2356 = vmul.f32 %v1815, %v2324
        %v2357 = vmul.f32 %v1818, %v2325
        %v2358 = vmul.f32 %v1823, %v2326
        %v2359 = vmul.f32 %v1826, %v2327
        %v2360 = vmul.f32 %v1831, %v2328
        %v2361 = vmul.f32 %v1834, %v2329
        %v2362 = vmul.f32 %v1839, %v2330
        %v2363 = vmul.f32 %v1842, %v2331
        %v2364 = vmul.f32 %v1847, %v2332
        %v2365 = vmul.f32 %v1850, %v2333
        %v2366 = vmul.f32 %v1855, %v2334
        %v2367 = vmul.f32 %v1858, %v2335
        %v2368 = vmul.f32 %v1863, %v2336
        %v2369 = vmul.f32 %v1866, %v2337
        %v2370 = vmul.f32 %v1871, %v2338
        %v2371 = vmul.f32 %v1874, %v2339
        %v2372 = vmul.f32 %v1879, %v2340
        %v2373 = vmul.f32 %v1882, %v2341
        %v2374 = vmul.f32 %v1887, %v2342
        %v2375 = vmul.f32 %v1890, %v2343
        %v2376 = vmul.f32 %v1895, %v2344
        %v2377 = vmul.f32 %v1898, %v2345
        %v2378 = vmul.f32 %v1903, %v2346
        %v2379 = vmul.f32 %v1906, %v2347
        %v2380 = vmul.f32 %v1911, %v2348
        %v2381 = vmul.f32 %v1914, %v2349
        %v2382 = vmul.f32 %v2350, %v2064
        %v2383 = vmul.f32 %v2351, %v2067
        %v2384 = vmul.f32 %v2352, %v2072
        %v2385 = vmul.f32 %v2353, %v2075
        %v2386 = vmul.f32 %v2354, %v2080
        %v2387 = vmul.f32 %v2355, %v2083
        %v2388 = vmul.f32 %v2356, %v2088
        %v2389 = vmul.f32 %v2357, %v2091
        %v2390 = vmul.f32 %v2358, %v2096
        %v2391 = vmul.f32 %v2359, %v2099
        %v2392 = vmul.f32 %v2360, %v2104
        %v2393 = vmul.f32 %v2361, %v2107
        %v2394 = vmul.f32 %v2362, %v2112
        %v2395 = vmul.f32 %v2363, %v2115
        %v2396 = vmul.f32 %v2364, %v2120
        %v2397 = vmul.f32 %v2365, %v2123
        %v2398 = vmul.f32 %v2366, %v2128
        %v2399 = vmul.f32 %v2367, %v2131
        %v2400 = vmul.f32 %v2368, %v2136
        %v2401 = vmul.f32 %v2369, %v2139
        %v2402 = vmul.f32 %v2370, %v2144
        %v2403 = vmul.f32 %v2371, %v2147
        %v2404 = vmul.f32 %v2372, %v2152
        %v2405 = vmul.f32 %v2373, %v2155
        %v2406 = vmul.f32 %v2374, %v2160
        %v2407 = vmul.f32 %v2375, %v2163
        %v2408 = vmul.f32 %v2376, %v2168
        %v2409 = vmul.f32 %v2377, %v2171
        %v2410 = vmul.f32 %v2378, %v2176
        %v2411 = vmul.f32 %v2379, %v2179
        %v2412 = vmul.f32 %v2380, %v2184
        %v2413 = vmul.f32 %v2381, %v2187
        %2414 = vst [vmem:[%s421] sm:$0xff] %v2382
        %2415 = vst [vmem:[%s421 + $0x8] sm:$0xff] %v2383
        %2416 = vst [vmem:[%s421 + $0x10] sm:$0xff] %v2384
        %2417 = vst [vmem:[%s421 + $0x18] sm:$0xff] %v2385
        %2418 = vst [vmem:[%s421 + $0x20] sm:$0xff] %v2386
        %2419 = vst [vmem:[%s421 + $0x28] sm:$0xff] %v2387
        %2420 = vst [vmem:[%s421 + $0x30] sm:$0xff] %v2388
        %2421 = vst [vmem:[%s421 + $0x38] sm:$0xff] %v2389
        %2422 = vst [vmem:[%s421 + $0x40] sm:$0xff] %v2390
        %2423 = vst [vmem:[%s421 + $0x48] sm:$0xff] %v2391
        %2424 = vst [vmem:[%s421 + $0x50] sm:$0xff] %v2392
        %2425 = vst [vmem:[%s421 + $0x58] sm:$0xff] %v2393
        %2426 = vst [vmem:[%s421 + $0x60] sm:$0xff] %v2394
        %2427 = vst [vmem:[%s421 + $0x68] sm:$0xff] %v2395
        %2428 = vst [vmem:[%s421 + $0x70] sm:$0xff] %v2396
        %2429 = vst [vmem:[%s421 + $0x78] sm:$0xff] %v2397
        %2430 = vst [vmem:[%s421 + $0x80] sm:$0xff] %v2398
        %2431 = vst [vmem:[%s421 + $0x88] sm:$0xff] %v2399
        %2432 = vst [vmem:[%s421 + $0x90] sm:$0xff] %v2400
        %2433 = vst [vmem:[%s421 + $0x98] sm:$0xff] %v2401
        %2434 = vst [vmem:[%s421 + $0xa0] sm:$0xff] %v2402
        %2435 = vst [vmem:[%s421 + $0xa8] sm:$0xff] %v2403
        %2436 = vst [vmem:[%s421 + $0xb0] sm:$0xff] %v2404
        %2437 = vst [vmem:[%s421 + $0xb8] sm:$0xff] %v2405
        %2438 = vst [vmem:[%s421 + $0xc0] sm:$0xff] %v2406
        %2439 = vst [vmem:[%s421 + $0xc8] sm:$0xff] %v2407
        %2440 = vst [vmem:[%s421 + $0xd0] sm:$0xff] %v2408
        %2441 = vst [vmem:[%s421 + $0xd8] sm:$0xff] %v2409
        %2442 = vst [vmem:[%s421 + $0xe0] sm:$0xff] %v2410
        %2443 = vst [vmem:[%s421 + $0xe8] sm:$0xff] %v2411
        %2444 = vst [vmem:[%s421 + $0xf0] sm:$0xff] %v2412
        %2445 = vst [vmem:[%s421 + $0xf8] sm:$0xff] %v2413
        %s2446 = sand.u32 %s257, 1
        %s2447 = scalar_lea.sflag [#allocation3], %s2446
        %s2448 = sand.u32 %s257, 1
        %s2449 = smul.addr %s2448, 256
        %s2450 = scalar_lea.vmem [#allocation2], %s2449
        // Predicated region
        $region61: #{tpu_custom_call.1} parent=59 // pred_check
          %p2451 = pneg %p267
        $region62: #{tpu_custom_call.1} parent=59 // pred_check_branch
          %2453 = sbr.rel (%p2451) target = $region64
        $region63: #{tpu_custom_call.1} parent=59 // pred_region
          %s2454 = smul.u32 32, %s24
          %s2455 = ssub.s32 63, %s2454
          %p2456 = scmp.lt.s32.totalorder %s2455, 32
          %s2457 = scalar_select %p2456, %s2455, 32
          %s2458 = smul.u32 128, %s2457
          %s2460 = ssub.s32 4096, %s2458
          %2461 = vsyncadd %s2447, %s2460
          %p2462 = scmp.ne.s32.totalorder 0, %s2458
          %s2463 = smul.addr %s2454, 128
          %s2464 = scalar_lea.hbm %s10, %s2463
          %s2465 = smul.u32 8, %s2457
          %s2466 = sshll.u32 %s2450, 4
          %s2467 = int_to_ptr.vmem [resolvable:$true] %s2466
          %s2468 = sshll.u32 %s2465, 4
          %2472 = dma.vmem_to_hbm [thread:$0]  (%p2462), %s2467, %s2468, %s2464, %s2447, 128, 128, 8
        $region64: #{tpu_custom_call.1} parent=59 // pred_fallthru
          _
      $region60: #{tpu_custom_call.1} parent=5 // pred_fallthru
        _
      %p2473 = scmp.le.s32.totalorder 2, %s19
      // Predicated region
      $region65: #{tpu_custom_call.1} parent=5 // pred_check
        %p2474 = pneg %p2473
      $region66: #{tpu_custom_call.1} parent=5 // pred_check_branch
        %2476 = sbr.rel (%p2474) target = $region68
      $region67: #{tpu_custom_call.1} parent=5 // pred_region
        %s2477 = ssub.s32 %s19, 2
        // Predicated region
        $region69: #{tpu_custom_call.1} parent=67 // pred_check
          %p2478 = pneg %p273
        $region70: #{tpu_custom_call.1} parent=67 // pred_check_branch
          %2480 = sbr.rel (%p2478) target = $region72
        $region71: #{tpu_custom_call.1} parent=67 // pred_region
          %s2481 = sand.u32 %s258, 1
          %s2482 = scalar_lea.sflag [#allocation3], %s2481
          %s2483 = sand.u32 %s258, 1
          %s2484 = smul.addr %s2483, 256
          %s2485 = scalar_lea.vmem [#allocation2], %s2484
          %2486 = dma.done %s2482, 4096
        $region72: #{tpu_custom_call.1} parent=67 // pred_fallthru
          _
      $region68: #{tpu_custom_call.1} parent=5 // pred_fallthru
        _
    $region6: #{tpu_custom_call.1} parent=1 // loop_footer
      %s23 = sadd.s32 1, %s19
    $region7: #{tpu_custom_call.1} parent=1 // loop_footer_branch
      %18 = sbr.rel target = $region3
    $region8: #{tpu_custom_call.1} parent=1 // loop_exit
      _
    %2487 = vsyncpa [#allocation3], 1
    %s2488 = scalar_lea.sflag [#allocation3], 1
    %2489 = vsyncpa %s2488, 1

</llo_original>
